<compile_context>
chip_gen: v7x
topology: tpu7x:2x2x1
jax: 0.10.0
libtpu: 0.0.40
codegen_flags: <defaults>
</compile_context>

<pallas_src>
import math

import jax
import jax.numpy as jnp
from jax.experimental import pallas as pl
from jax.experimental.pallas import tpu as pltpu


def _choose_head_group(num_heads, head_dim, target_lanes=256):
    """Smallest divisor G of num_heads with G*head_dim >= target_lanes
    (256 = v6e/v7x MXU width; also fine on v5e), else all heads in one group."""
    divs = sorted(d for d in range(1, num_heads + 1) if num_heads % d == 0)
    for g in divs:
        if g * head_dim >= target_lanes:
            return g
    return divs[-1]


def _vmem_limit_bytes():
    """Scoped-VMEM limit: ~75% of physical VMEM, capped at 100 MiB.
    -> ~96 MiB on v5e/v6e (128 MiB), ~48 MiB on v7x (64 MiB)."""
    try:
        cap = int(pltpu.get_tpu_info().vmem_capacity_bytes)
    except Exception:  # conservative fallback if the query is unavailable
        cap = 64 << 20
    return min(cap * 3 // 4, 100 << 20)


def multi_head_attention(query, key, value, params, *, num_heads,
                         block_b=None, group_heads=None):
    """query/key/value: (B, S, D).  params: wq/wk/wv/wo (D, D) stored
    pre-transposed (y = x @ W + b) and biases bq/bk/bv/bo of shape (1, D)."""
    B, S, D = query.shape
    H = num_heads
    hd = D // H
    assert H * hd == D, "d_model must be divisible by num_heads"
    # Precondition for the layout-free (Bt,S,D)->(Bt*S,D) reshape (review item:
    # S must be a sublane multiple; pad on the host otherwise).
    assert S % 8 == 0, "seq_len must be a multiple of 8 (pad on the host)"

    G = group_heads if group_heads is not None else _choose_head_group(H, hd)
    assert H % G == 0
    HG = H // G                    # head groups  (grid axis 1)
    Ghd = G * hd                   # grouped projection width

    # bf16 MXU operands for f32 inputs (f32 matmuls are multi-pass on the MXU).
    in_dtype = query.dtype
    mxu_dtype = jnp.bfloat16 if in_dtype == jnp.float32 else in_dtype
    bytes_act = jnp.dtype(in_dtype).itemsize
    bytes_mxu = jnp.dtype(mxu_dtype).itemsize

    vmem_limit = _vmem_limit_bytes()

    # Keep ALL weight slabs resident in VMEM when they are small enough
    # (removes their re-fetch at every new batch tile); otherwise stream the
    # per-group slab via the BlockSpec.
    weight_bytes = 4 * D * D * bytes_mxu
    weights_resident = weight_bytes <= vmem_limit // 4

    def _vmem_bytes(bb):
        n = bb * S
        est = 0
        est += 2 * 3 * n * D * bytes_act          # q/k/v blocks (double-buffered)
        est += 2 * n * D * bytes_act              # output block (double-buffered)
        est += 4 * n * D                          # f32 accumulator scratch
        est += bytes_mxu * n * Ghd                # grouped head-output scratch
        est += 3 * n * S * 4                      # score tile + exp/p (f32)
        est += 3 * n * Ghd * (4 + bytes_mxu)      # Qg/Kg/Vg (f32 + cast copies)
        if weights_resident:
            est += weight_bytes                   # all weights, fetched once
        else:
            est += 2 * 4 * D * Ghd * bytes_mxu    # per-group slabs, double-buffered
        est += 4 * (3 * HG * Ghd + D)             # resident biases (f32)
        return est

    if block_b is None:
        divs = [d for d in range(1, B + 1) if B % d == 0]
        fits = [d for d in divs if _vmem_bytes(d) <= vmem_limit] or [1]
        # keep >= 2 batch tiles when possible (v7x dual-TC / megacore).
        pref = [d for d in fits if B // d >= 2]
        block_b = max(pref) if pref else max(fits)
    assert B % block_b == 0
    nb = B // block_b

    scale = 1.0 / math.sqrt(float(hd))

    # ---- host-side rearrangement into per-group slabs (plain XLA, once) ----
    def split_w_cols(w):           # (D, D) -> (HG, D, Ghd): columns of group g
        return jnp.transpose(w.reshape(D, HG, Ghd), (1, 0, 2))

    def split_b(b):                # (1, D) -> (HG, 1, Ghd)
        return jnp.transpose(b.reshape(1, HG, Ghd), (1, 0, 2))

    wq_h = split_w_cols(params["wq"] * scale).astype(mxu_dtype)  # scale folded in
    wk_h = split_w_cols(params["wk"]).astype(mxu_dtype)
    wv_h = split_w_cols(params["wv"]).astype(mxu_dtype)
    bq_h = split_b(params["bq"] * scale).astype(jnp.float32)
    bk_h = split_b(params["bk"]).astype(jnp.float32)
    bv_h = split_b(params["bv"]).astype(jnp.float32)
    wo_h = params["wo"].reshape(HG, Ghd, D).astype(mxu_dtype)    # rows of group g
    bo = params["bo"].astype(jnp.float32)                        # (1, D)

    # ---------------------------- kernel ----------------------------
    def kernel(q_ref, k_ref, v_ref,
               wq_ref, wk_ref, wv_ref,
               bq_ref, bk_ref, bv_ref,
               wo_ref, bo_ref,
               o_ref, acc_ref, ho_ref):
        g = pl.program_id(1)
        Bt = q_ref.shape[0]
        N = Bt * S
        w_idx = g if weights_resident else 0

        # Initialize the f32 accumulator with the output-projection bias once
        # per batch tile (head-group axis is the innermost, "arbitrary" axis).
        @pl.when(g == 0)
        def _init():
            acc_ref[...] = jnp.broadcast_to(
                bo_ref[...].astype(jnp.float32), acc_ref.shape)

        # Fold (Bt, S) into one row axis; cast once to the MXU operand dtype.
        xq = q_ref[...].reshape(N, D).astype(mxu_dtype)
        xk = k_ref[...].reshape(N, D).astype(mxu_dtype)
        xv = v_ref[...].reshape(N, D).astype(mxu_dtype)

        # Grouped projections: one wide (N, D) x (D, G*hd) matmul each,
        # f32 accumulation + bias, then a single cast (no lingering f32 copy).
        Qg = (jnp.dot(xq, wq_ref[w_idx], preferred_element_type=jnp.float32)
              + bq_ref[g]).astype(mxu_dtype).reshape(Bt, S, Ghd)
        Kg = (jnp.dot(xk, wk_ref[w_idx], preferred_element_type=jnp.float32)
              + bk_ref[g]).astype(mxu_dtype).reshape(Bt, S, Ghd)
        Vg = (jnp.dot(xv, wv_ref[w_idx], preferred_element_type=jnp.float32)
              + bv_ref[g]).astype(mxu_dtype).reshape(Bt, S, Ghd)

        # Per-head attention inside the group (static unroll over G heads).
        for h in range(G):
            lo = h * hd
            Qh = Qg[:, :, lo:lo + hd]
            Kh = Kg[:, :, lo:lo + hd]
            Vh = Vg[:, :, lo:lo + hd]

            # Scores: batched contraction on the last axes (no .T / transpose).
            s = jnp.einsum("bqd,bkd->bqk", Qh, Kh,
                           preferred_element_type=jnp.float32)   # (Bt, S, S)

            # Numerically stable softmax in f32 (exact reciprocal for parity).
            m = jnp.max(s, axis=-1, keepdims=True)
            e = jnp.exp(s - m)
            p = e * pl.reciprocal(jnp.sum(e, axis=-1, keepdims=True),
                                  approx=False)

            ho = jnp.einsum("bqk,bkd->bqd", p.astype(mxu_dtype), Vh,
                            preferred_element_type=jnp.float32)  # (Bt, S, hd)
            ho_ref[:, lo:lo + hd] = ho.reshape(N, hd).astype(mxu_dtype)

        # Output projection for the whole group: one (N, G*hd) x (G*hd, D) matmul.
        acc_ref[...] += jnp.dot(ho_ref[...], wo_ref[w_idx],
                                preferred_element_type=jnp.float32)

        @pl.when(g == pl.num_programs(1) - 1)
        def _store():
            o_ref[...] = acc_ref[...].reshape(Bt, S, D).astype(o_ref.dtype)

    # ---------------------------- specs ----------------------------
    act_spec = pl.BlockSpec((block_b, S, D), lambda b, g: (b, 0, 0))
    if weights_resident:
        w_spec = pl.BlockSpec((HG, D, Ghd), lambda b, g: (0, 0, 0))   # resident
        wo_spec = pl.BlockSpec((HG, Ghd, D), lambda b, g: (0, 0, 0))  # resident
    else:
        w_spec = pl.BlockSpec((1, D, Ghd), lambda b, g: (g, 0, 0))
        wo_spec = pl.BlockSpec((1, Ghd, D), lambda b, g: (g, 0, 0))
    bias_spec = pl.BlockSpec((HG, 1, Ghd), lambda b, g: (0, 0, 0))    # resident
    bo_spec = pl.BlockSpec((1, D), lambda b, g: (0, 0))               # resident

    return pl.pallas_call(
        kernel,
        out_shape=jax.ShapeDtypeStruct((B, S, D), in_dtype),
        grid=(nb, HG),
        in_specs=[act_spec, act_spec, act_spec,
                  w_spec, w_spec, w_spec,
                  bias_spec, bias_spec, bias_spec,
                  wo_spec, bo_spec],
        out_specs=act_spec,
        scratch_shapes=[
            pltpu.VMEM((block_b * S, D), jnp.float32),   # output accumulator
            pltpu.VMEM((block_b * S, Ghd), mxu_dtype),   # grouped head outputs
        ],
        compiler_params=pltpu.CompilerParams(
            dimension_semantics=("parallel", "arbitrary"),
            vmem_limit_bytes=vmem_limit),
    )(query, key, value,
      wq_h, wk_h, wv_h, bq_h, bk_h, bv_h, wo_h, bo)


def mha_reference(query, key, value, params, *, num_heads):
    """Pure-JAX reference matching the PyTorch forward (mask=None)."""
    B, S, D = query.shape
    hd = D // num_heads

    def proj(x, w, b):
        return x @ w + b

    Q = proj(query, params["wq"], params["bq"]).reshape(B, S, num_heads, hd).transpose(0, 2, 1, 3)
    K = proj(key,   params["wk"], params["bk"]).reshape(B, S, num_heads, hd).transpose(0, 2, 1, 3)
    V = proj(value, params["wv"], params["bv"]).reshape(B, S, num_heads, hd).transpose(0, 2, 1, 3)
    scores = jnp.einsum("bhqd,bhkd->bhqk", Q, K) / jnp.sqrt(jnp.float32(hd))
    w = jax.nn.softmax(scores, axis=-1)
    o = jnp.einsum("bhqk,bhkd->bhqd", w, V).transpose(0, 2, 1, 3).reshape(B, S, D)
    return o @ params["wo"] + params["bo"]


if __name__ == "__main__":
    # Small shapes consistent with the module: batch=2, seq=8, d_model=32, heads=4.
    B, S, D, H = 2, 8, 32, 4

    key0 = jax.random.PRNGKey(0)
    ks = jax.random.split(key0, 16)

    bound = 1.0 / math.sqrt(D)

    def u(k, shape):
        return jax.random.uniform(k, shape, jnp.float32, -bound, bound)

    params = {
        "wq": u(ks[0], (D, D)), "bq": u(ks[1], (1, D)),
        "wk": u(ks[2], (D, D)), "bk": u(ks[3], (1, D)),
        "wv": u(ks[4], (D, D)), "bv": u(ks[5], (1, D)),
        "wo": u(ks[6], (D, D)), "bo": u(ks[7], (1, D)),
    }

    query = jax.random.normal(ks[8],  (B, S, D), jnp.float32)
    key_  = jax.random.normal(ks[9],  (B, S, D), jnp.float32)
    value = jax.random.normal(ks[10], (B, S, D), jnp.float32)

    out = multi_head_attention(query, key_, value, params, num_heads=H)
    out = jax.block_until_ready(out)

    ref = mha_reference(query, key_, value, params, num_heads=H)
    assert out.shape == (B, S, D)
    # Tolerance accounts for bf16 MXU operands (f32 accumulation) vs the f32 reference.
    assert jnp.allclose(out, ref, atol=2e-2, rtol=2e-2), "mismatch vs reference"

    print("KERNEL_OK")
</pallas_src>

<mosaic_0001>
module attributes {stable_mosaic.version = 11 : i64} {
  func.func @kernel(%arg0: i32, %arg1: i32, %arg2: memref<1x8x32xf32, #tpu.memory_space<vmem>>, %arg3: memref<1x8x32xf32, #tpu.memory_space<vmem>>, %arg4: memref<1x8x32xf32, #tpu.memory_space<vmem>>, %arg5: memref<1x32x32xbf16, #tpu.memory_space<vmem>>, %arg6: memref<1x32x32xbf16, #tpu.memory_space<vmem>>, %arg7: memref<1x32x32xbf16, #tpu.memory_space<vmem>>, %arg8: memref<1x1x32xf32, #tpu.memory_space<vmem>>, %arg9: memref<1x1x32xf32, #tpu.memory_space<vmem>>, %arg10: memref<1x1x32xf32, #tpu.memory_space<vmem>>, %arg11: memref<1x32x32xbf16, #tpu.memory_space<vmem>>, %arg12: memref<1x32xf32, #tpu.memory_space<vmem>>, %arg13: memref<1x8x32xf32, #tpu.memory_space<vmem>>, %arg14: memref<8x32xf32, #tpu.memory_space<vmem>>, %arg15: memref<8x32xbf16, #tpu.memory_space<vmem>>) attributes {dimension_semantics = [#tpu.dimension_semantics<parallel>, #tpu.dimension_semantics<arbitrary>], iteration_bounds = array<i64: 2, 1>, scalar_prefetch = 0 : i64, scratch_operands = 2 : i64, tpu.core_type = #tpu.core_type<tc>, window_params = [{transform_indices = @transform_0, window_bounds = array<i64: 1, 8, 32>}, {transform_indices = @transform_1, window_bounds = array<i64: 1, 8, 32>}, {transform_indices = @transform_2, window_bounds = array<i64: 1, 8, 32>}, {pipeline_mode = #tpu.pipeline_mode<synchronous>, transform_indices = @transform_3, window_bounds = array<i64: 1, 32, 32>}, {pipeline_mode = #tpu.pipeline_mode<synchronous>, transform_indices = @transform_4, window_bounds = array<i64: 1, 32, 32>}, {pipeline_mode = #tpu.pipeline_mode<synchronous>, transform_indices = @transform_5, window_bounds = array<i64: 1, 32, 32>}, {pipeline_mode = #tpu.pipeline_mode<synchronous>, transform_indices = @transform_6, window_bounds = array<i64: 1, 1, 32>}, {pipeline_mode = #tpu.pipeline_mode<synchronous>, transform_indices = @transform_7, window_bounds = array<i64: 1, 1, 32>}, {pipeline_mode = #tpu.pipeline_mode<synchronous>, transform_indices = @transform_8, window_bounds = array<i64: 1, 1, 32>}, {pipeline_mode = #tpu.pipeline_mode<synchronous>, transform_indices = @transform_9, window_bounds = array<i64: 1, 32, 32>}, {pipeline_mode = #tpu.pipeline_mode<synchronous>, transform_indices = @transform_10, window_bounds = array<i64: 1, 32>}, {transform_indices = @transform_11, window_bounds = array<i64: 1, 8, 32>}]} {
    %c0_i32 = arith.constant 0 : i32
    %0 = arith.cmpi eq, %arg1, %c0_i32 : i32
    %1 = arith.extui %0 : i1 to i32
    %c0_i32_0 = arith.constant 0 : i32
    %2 = arith.cmpi ne, %1, %c0_i32_0 : i32
    scf.if %2 {
      %c0_55 = arith.constant 0 : index
      %c0_56 = arith.constant 0 : index
      %132 = vector.load %arg12[%c0_55, %c0_56] : memref<1x32xf32, #tpu.memory_space<vmem>>, vector<1x32xf32>
      %133 = vector.shape_cast %132 : vector<1x32xf32> to vector<1x32xf32>
      %134 = vector.broadcast %133 : vector<1x32xf32> to vector<8x32xf32>
      %c0_57 = arith.constant 0 : index
      %c0_58 = arith.constant 0 : index
      %135 = vector.load %arg14[%c0_57, %c0_58] : memref<8x32xf32, #tpu.memory_space<vmem>>, vector<8x32xf32>
      tpu.vector_store %arg14[%c0_57, %c0_58], %134 {strides = array<i32>} : memref<8x32xf32, #tpu.memory_space<vmem>>, vector<8x32xf32>,
    } else {
    }
    %c0 = arith.constant 0 : index
    %c0_1 = arith.constant 0 : index
    %c0_2 = arith.constant 0 : index
    %3 = vector.load %arg2[%c0, %c0_1, %c0_2] : memref<1x8x32xf32, #tpu.memory_space<vmem>>, vector<1x8x32xf32>
    %4 = vector.shape_cast %3 : vector<1x8x32xf32> to vector<8x32xf32>
    %5 = arith.truncf %4 : vector<8x32xf32> to vector<8x32xbf16>
    %c0_3 = arith.constant 0 : index
    %c0_4 = arith.constant 0 : index
    %c0_5 = arith.constant 0 : index
    %6 = vector.load %arg3[%c0_3, %c0_4, %c0_5] : memref<1x8x32xf32, #tpu.memory_space<vmem>>, vector<1x8x32xf32>
    %7 = vector.shape_cast %6 : vector<1x8x32xf32> to vector<8x32xf32>
    %8 = arith.truncf %7 : vector<8x32xf32> to vector<8x32xbf16>
    %c0_6 = arith.constant 0 : index
    %c0_7 = arith.constant 0 : index
    %c0_8 = arith.constant 0 : index
    %9 = vector.load %arg4[%c0_6, %c0_7, %c0_8] : memref<1x8x32xf32, #tpu.memory_space<vmem>>, vector<1x8x32xf32>
    %10 = vector.shape_cast %9 : vector<1x8x32xf32> to vector<8x32xf32>
    %11 = arith.truncf %10 : vector<8x32xf32> to vector<8x32xbf16>
    %12 = arith.index_cast %arg1 : i32 to index
    %c0_9 = arith.constant 0 : index
    %c0_10 = arith.constant 0 : index
    %13 = vector.load %arg5[%12, %c0_9, %c0_10] : memref<1x32x32xbf16, #tpu.memory_space<vmem>>, vector<1x32x32xbf16>
    %14 = vector.shape_cast %13 : vector<1x32x32xbf16> to vector<32x32xbf16>
    %cst = arith.constant dense<0.000000e+00> : vector<8x32xf32>
    %15 = tpu.matmul %5, %14, %cst {dimension_numbers = #tpu.dot_dimension_numbers<[1], [0], [0], [1], [0, 0, 1, 1], [], []>} : vector<8x32xbf16>, vector<32x32xbf16>, vector<8x32xf32> -> vector<8x32xf32>
    %16 = arith.index_cast %arg1 : i32 to index
    %c0_11 = arith.constant 0 : index
    %c0_12 = arith.constant 0 : index
    %17 = vector.load %arg8[%16, %c0_11, %c0_12] : memref<1x1x32xf32, #tpu.memory_space<vmem>>, vector<1x1x32xf32>
    %18 = vector.shape_cast %17 : vector<1x1x32xf32> to vector<1x32xf32>
    %19 = vector.broadcast %18 : vector<1x32xf32> to vector<8x32xf32>
    %20 = arith.addf %15, %19 : vector<8x32xf32>
    %21 = arith.truncf %20 : vector<8x32xf32> to vector<8x32xbf16>
    %22 = vector.shape_cast %21 : vector<8x32xbf16> to vector<1x8x32xbf16>
    %23 = arith.index_cast %arg1 : i32 to index
    %c0_13 = arith.constant 0 : index
    %c0_14 = arith.constant 0 : index
    %24 = vector.load %arg6[%23, %c0_13, %c0_14] : memref<1x32x32xbf16, #tpu.memory_space<vmem>>, vector<1x32x32xbf16>
    %25 = vector.shape_cast %24 : vector<1x32x32xbf16> to vector<32x32xbf16>
    %cst_15 = arith.constant dense<0.000000e+00> : vector<8x32xf32>
    %26 = tpu.matmul %8, %25, %cst_15 {dimension_numbers = #tpu.dot_dimension_numbers<[1], [0], [0], [1], [0, 0, 1, 1], [], []>} : vector<8x32xbf16>, vector<32x32xbf16>, vector<8x32xf32> -> vector<8x32xf32>
    %27 = arith.index_cast %arg1 : i32 to index
    %c0_16 = arith.constant 0 : index
    %c0_17 = arith.constant 0 : index
    %28 = vector.load %arg9[%27, %c0_16, %c0_17] : memref<1x1x32xf32, #tpu.memory_space<vmem>>, vector<1x1x32xf32>
    %29 = vector.shape_cast %28 : vector<1x1x32xf32> to vector<1x32xf32>
    %30 = vector.broadcast %29 : vector<1x32xf32> to vector<8x32xf32>
    %31 = arith.addf %26, %30 : vector<8x32xf32>
    %32 = arith.truncf %31 : vector<8x32xf32> to vector<8x32xbf16>
    %33 = vector.shape_cast %32 : vector<8x32xbf16> to vector<1x8x32xbf16>
    %34 = arith.index_cast %arg1 : i32 to index
    %c0_18 = arith.constant 0 : index
    %c0_19 = arith.constant 0 : index
    %35 = vector.load %arg7[%34, %c0_18, %c0_19] : memref<1x32x32xbf16, #tpu.memory_space<vmem>>, vector<1x32x32xbf16>
    %36 = vector.shape_cast %35 : vector<1x32x32xbf16> to vector<32x32xbf16>
    %cst_20 = arith.constant dense<0.000000e+00> : vector<8x32xf32>
    %37 = tpu.matmul %11, %36, %cst_20 {dimension_numbers = #tpu.dot_dimension_numbers<[1], [0], [0], [1], [0, 0, 1, 1], [], []>} : vector<8x32xbf16>, vector<32x32xbf16>, vector<8x32xf32> -> vector<8x32xf32>
    %38 = arith.index_cast %arg1 : i32 to index
    %c0_21 = arith.constant 0 : index
    %c0_22 = arith.constant 0 : index
    %39 = vector.load %arg10[%38, %c0_21, %c0_22] : memref<1x1x32xf32, #tpu.memory_space<vmem>>, vector<1x1x32xf32>
    %40 = vector.shape_cast %39 : vector<1x1x32xf32> to vector<1x32xf32>
    %41 = vector.broadcast %40 : vector<1x32xf32> to vector<8x32xf32>
    %42 = arith.addf %37, %41 : vector<8x32xf32>
    %43 = arith.truncf %42 : vector<8x32xf32> to vector<8x32xbf16>
    %44 = vector.shape_cast %43 : vector<8x32xbf16> to vector<1x8x32xbf16>
    %45 = vector.extract_strided_slice %22 {offsets = [0, 0, 0], sizes = [1, 8, 8], strides = [1, 1, 1]} : vector<1x8x32xbf16> to vector<1x8x8xbf16>
    %46 = vector.extract_strided_slice %33 {offsets = [0, 0, 0], sizes = [1, 8, 8], strides = [1, 1, 1]} : vector<1x8x32xbf16> to vector<1x8x8xbf16>
    %47 = vector.extract_strided_slice %44 {offsets = [0, 0, 0], sizes = [1, 8, 8], strides = [1, 1, 1]} : vector<1x8x32xbf16> to vector<1x8x8xbf16>
    "tpu.trace_start"() <{level = 10 : i32, message = "bqd,bkd->bqk"}> : () -> ()
    %cst_23 = arith.constant dense<0.000000e+00> : vector<1x8x8xf32>
    %48 = tpu.matmul %45, %46, %cst_23 {dimension_numbers = #tpu.dot_dimension_numbers<[2], [2], [1], [1], [0, 0, 0, 1, 1, 1], [0], [0]>} : vector<1x8x8xbf16>, vector<1x8x8xbf16>, vector<1x8x8xf32> -> vector<1x8x8xf32>
    "tpu.trace_stop"() : () -> ()
    %cst_24 = arith.constant dense<0xFF800000> : vector<1x8xf32>
    %49 = vector.multi_reduction <maximumf>, %48, %cst_24 [2] : vector<1x8x8xf32> to vector<1x8xf32>
    %50 = vector.shape_cast %49 : vector<1x8xf32> to vector<1x8x1xf32>
    %51 = vector.broadcast %50 : vector<1x8x1xf32> to vector<1x8x8xf32>
    %52 = arith.subf %48, %51 : vector<1x8x8xf32>
    %53 = math.exp %52 : vector<1x8x8xf32>
    %cst_25 = arith.constant dense<0.000000e+00> : vector<1x8xf32>
    %54 = vector.multi_reduction <add>, %53, %cst_25 [2] : vector<1x8x8xf32> to vector<1x8xf32>
    %55 = vector.shape_cast %54 : vector<1x8xf32> to vector<1x8x1xf32>
    %56 = tpu.reciprocal %55 : vector<1x8x1xf32> -> vector<1x8x1xf32>
    %57 = vector.broadcast %56 : vector<1x8x1xf32> to vector<1x8x8xf32>
    %58 = arith.mulf %53, %57 : vector<1x8x8xf32>
    %59 = arith.truncf %58 : vector<1x8x8xf32> to vector<1x8x8xbf16>
    "tpu.trace_start"() <{level = 10 : i32, message = "bqk,bkd->bqd"}> : () -> ()
    %cst_26 = arith.constant dense<0.000000e+00> : vector<1x8x8xf32>
    %60 = tpu.matmul %59, %47, %cst_26 {dimension_numbers = #tpu.dot_dimension_numbers<[2], [1], [1], [2], [0, 0, 0, 1, 1, 2], [0], [0]>} : vector<1x8x8xbf16>, vector<1x8x8xbf16>, vector<1x8x8xf32> -> vector<1x8x8xf32>
    "tpu.trace_stop"() : () -> ()
    %61 = vector.shape_cast %60 : vector<1x8x8xf32> to vector<8x8xf32>
    %62 = arith.truncf %61 : vector<8x8xf32> to vector<8x8xbf16>
    %c0_27 = arith.constant 0 : index
    %c0_28 = arith.constant 0 : index
    %63 = vector.load %arg15[%c0_27, %c0_28] : memref<8x32xbf16, #tpu.memory_space<vmem>>, vector<8x8xbf16>
    tpu.vector_store %arg15[%c0_27, %c0_28], %62 {strides = array<i32>} : memref<8x32xbf16, #tpu.memory_space<vmem>>, vector<8x8xbf16>,
    %64 = vector.extract_strided_slice %22 {offsets = [0, 0, 8], sizes = [1, 8, 8], strides = [1, 1, 1]} : vector<1x8x32xbf16> to vector<1x8x8xbf16>
    %65 = vector.extract_strided_slice %33 {offsets = [0, 0, 8], sizes = [1, 8, 8], strides = [1, 1, 1]} : vector<1x8x32xbf16> to vector<1x8x8xbf16>
    %66 = vector.extract_strided_slice %44 {offsets = [0, 0, 8], sizes = [1, 8, 8], strides = [1, 1, 1]} : vector<1x8x32xbf16> to vector<1x8x8xbf16>
    "tpu.trace_start"() <{level = 10 : i32, message = "bqd,bkd->bqk"}> : () -> ()
    %cst_29 = arith.constant dense<0.000000e+00> : vector<1x8x8xf32>
    %67 = tpu.matmul %64, %65, %cst_29 {dimension_numbers = #tpu.dot_dimension_numbers<[2], [2], [1], [1], [0, 0, 0, 1, 1, 1], [0], [0]>} : vector<1x8x8xbf16>, vector<1x8x8xbf16>, vector<1x8x8xf32> -> vector<1x8x8xf32>
    "tpu.trace_stop"() : () -> ()
    %cst_30 = arith.constant dense<0xFF800000> : vector<1x8xf32>
    %68 = vector.multi_reduction <maximumf>, %67, %cst_30 [2] : vector<1x8x8xf32> to vector<1x8xf32>
    %69 = vector.shape_cast %68 : vector<1x8xf32> to vector<1x8x1xf32>
    %70 = vector.broadcast %69 : vector<1x8x1xf32> to vector<1x8x8xf32>
    %71 = arith.subf %67, %70 : vector<1x8x8xf32>
    %72 = math.exp %71 : vector<1x8x8xf32>
    %cst_31 = arith.constant dense<0.000000e+00> : vector<1x8xf32>
    %73 = vector.multi_reduction <add>, %72, %cst_31 [2] : vector<1x8x8xf32> to vector<1x8xf32>
    %74 = vector.shape_cast %73 : vector<1x8xf32> to vector<1x8x1xf32>
    %75 = tpu.reciprocal %74 : vector<1x8x1xf32> -> vector<1x8x1xf32>
    %76 = vector.broadcast %75 : vector<1x8x1xf32> to vector<1x8x8xf32>
    %77 = arith.mulf %72, %76 : vector<1x8x8xf32>
    %78 = arith.truncf %77 : vector<1x8x8xf32> to vector<1x8x8xbf16>
    "tpu.trace_start"() <{level = 10 : i32, message = "bqk,bkd->bqd"}> : () -> ()
    %cst_32 = arith.constant dense<0.000000e+00> : vector<1x8x8xf32>
    %79 = tpu.matmul %78, %66, %cst_32 {dimension_numbers = #tpu.dot_dimension_numbers<[2], [1], [1], [2], [0, 0, 0, 1, 1, 2], [0], [0]>} : vector<1x8x8xbf16>, vector<1x8x8xbf16>, vector<1x8x8xf32> -> vector<1x8x8xf32>
    "tpu.trace_stop"() : () -> ()
    %80 = vector.shape_cast %79 : vector<1x8x8xf32> to vector<8x8xf32>
    %81 = arith.truncf %80 : vector<8x8xf32> to vector<8x8xbf16>
    %c0_33 = arith.constant 0 : index
    %c8 = arith.constant 8 : index
    %82 = vector.load %arg15[%c0_33, %c8] : memref<8x32xbf16, #tpu.memory_space<vmem>>, vector<8x8xbf16>
    tpu.vector_store %arg15[%c0_33, %c8], %81 {strides = array<i32>} : memref<8x32xbf16, #tpu.memory_space<vmem>>, vector<8x8xbf16>,
    %83 = vector.extract_strided_slice %22 {offsets = [0, 0, 16], sizes = [1, 8, 8], strides = [1, 1, 1]} : vector<1x8x32xbf16> to vector<1x8x8xbf16>
    %84 = vector.extract_strided_slice %33 {offsets = [0, 0, 16], sizes = [1, 8, 8], strides = [1, 1, 1]} : vector<1x8x32xbf16> to vector<1x8x8xbf16>
    %85 = vector.extract_strided_slice %44 {offsets = [0, 0, 16], sizes = [1, 8, 8], strides = [1, 1, 1]} : vector<1x8x32xbf16> to vector<1x8x8xbf16>
    "tpu.trace_start"() <{level = 10 : i32, message = "bqd,bkd->bqk"}> : () -> ()
    %cst_34 = arith.constant dense<0.000000e+00> : vector<1x8x8xf32>
    %86 = tpu.matmul %83, %84, %cst_34 {dimension_numbers = #tpu.dot_dimension_numbers<[2], [2], [1], [1], [0, 0, 0, 1, 1, 1], [0], [0]>} : vector<1x8x8xbf16>, vector<1x8x8xbf16>, vector<1x8x8xf32> -> vector<1x8x8xf32>
    "tpu.trace_stop"() : () -> ()
    %cst_35 = arith.constant dense<0xFF800000> : vector<1x8xf32>
    %87 = vector.multi_reduction <maximumf>, %86, %cst_35 [2] : vector<1x8x8xf32> to vector<1x8xf32>
    %88 = vector.shape_cast %87 : vector<1x8xf32> to vector<1x8x1xf32>
    %89 = vector.broadcast %88 : vector<1x8x1xf32> to vector<1x8x8xf32>
    %90 = arith.subf %86, %89 : vector<1x8x8xf32>
    %91 = math.exp %90 : vector<1x8x8xf32>
    %cst_36 = arith.constant dense<0.000000e+00> : vector<1x8xf32>
    %92 = vector.multi_reduction <add>, %91, %cst_36 [2] : vector<1x8x8xf32> to vector<1x8xf32>
    %93 = vector.shape_cast %92 : vector<1x8xf32> to vector<1x8x1xf32>
    %94 = tpu.reciprocal %93 : vector<1x8x1xf32> -> vector<1x8x1xf32>
    %95 = vector.broadcast %94 : vector<1x8x1xf32> to vector<1x8x8xf32>
    %96 = arith.mulf %91, %95 : vector<1x8x8xf32>
    %97 = arith.truncf %96 : vector<1x8x8xf32> to vector<1x8x8xbf16>
    "tpu.trace_start"() <{level = 10 : i32, message = "bqk,bkd->bqd"}> : () -> ()
    %cst_37 = arith.constant dense<0.000000e+00> : vector<1x8x8xf32>
    %98 = tpu.matmul %97, %85, %cst_37 {dimension_numbers = #tpu.dot_dimension_numbers<[2], [1], [1], [2], [0, 0, 0, 1, 1, 2], [0], [0]>} : vector<1x8x8xbf16>, vector<1x8x8xbf16>, vector<1x8x8xf32> -> vector<1x8x8xf32>
    "tpu.trace_stop"() : () -> ()
    %99 = vector.shape_cast %98 : vector<1x8x8xf32> to vector<8x8xf32>
    %100 = arith.truncf %99 : vector<8x8xf32> to vector<8x8xbf16>
    %c0_38 = arith.constant 0 : index
    %c16 = arith.constant 16 : index
    %101 = vector.load %arg15[%c0_38, %c16] : memref<8x32xbf16, #tpu.memory_space<vmem>>, vector<8x8xbf16>
    tpu.vector_store %arg15[%c0_38, %c16], %100 {strides = array<i32>} : memref<8x32xbf16, #tpu.memory_space<vmem>>, vector<8x8xbf16>,
    %102 = vector.extract_strided_slice %22 {offsets = [0, 0, 24], sizes = [1, 8, 8], strides = [1, 1, 1]} : vector<1x8x32xbf16> to vector<1x8x8xbf16>
    %103 = vector.extract_strided_slice %33 {offsets = [0, 0, 24], sizes = [1, 8, 8], strides = [1, 1, 1]} : vector<1x8x32xbf16> to vector<1x8x8xbf16>
    %104 = vector.extract_strided_slice %44 {offsets = [0, 0, 24], sizes = [1, 8, 8], strides = [1, 1, 1]} : vector<1x8x32xbf16> to vector<1x8x8xbf16>
    "tpu.trace_start"() <{level = 10 : i32, message = "bqd,bkd->bqk"}> : () -> ()
    %cst_39 = arith.constant dense<0.000000e+00> : vector<1x8x8xf32>
    %105 = tpu.matmul %102, %103, %cst_39 {dimension_numbers = #tpu.dot_dimension_numbers<[2], [2], [1], [1], [0, 0, 0, 1, 1, 1], [0], [0]>} : vector<1x8x8xbf16>, vector<1x8x8xbf16>, vector<1x8x8xf32> -> vector<1x8x8xf32>
    "tpu.trace_stop"() : () -> ()
    %cst_40 = arith.constant dense<0xFF800000> : vector<1x8xf32>
    %106 = vector.multi_reduction <maximumf>, %105, %cst_40 [2] : vector<1x8x8xf32> to vector<1x8xf32>
    %107 = vector.shape_cast %106 : vector<1x8xf32> to vector<1x8x1xf32>
    %108 = vector.broadcast %107 : vector<1x8x1xf32> to vector<1x8x8xf32>
    %109 = arith.subf %105, %108 : vector<1x8x8xf32>
    %110 = math.exp %109 : vector<1x8x8xf32>
    %cst_41 = arith.constant dense<0.000000e+00> : vector<1x8xf32>
    %111 = vector.multi_reduction <add>, %110, %cst_41 [2] : vector<1x8x8xf32> to vector<1x8xf32>
    %112 = vector.shape_cast %111 : vector<1x8xf32> to vector<1x8x1xf32>
    %113 = tpu.reciprocal %112 : vector<1x8x1xf32> -> vector<1x8x1xf32>
    %114 = vector.broadcast %113 : vector<1x8x1xf32> to vector<1x8x8xf32>
    %115 = arith.mulf %110, %114 : vector<1x8x8xf32>
    %116 = arith.truncf %115 : vector<1x8x8xf32> to vector<1x8x8xbf16>
    "tpu.trace_start"() <{level = 10 : i32, message = "bqk,bkd->bqd"}> : () -> ()
    %cst_42 = arith.constant dense<0.000000e+00> : vector<1x8x8xf32>
    %117 = tpu.matmul %116, %104, %cst_42 {dimension_numbers = #tpu.dot_dimension_numbers<[2], [1], [1], [2], [0, 0, 0, 1, 1, 2], [0], [0]>} : vector<1x8x8xbf16>, vector<1x8x8xbf16>, vector<1x8x8xf32> -> vector<1x8x8xf32>
    "tpu.trace_stop"() : () -> ()
    %118 = vector.shape_cast %117 : vector<1x8x8xf32> to vector<8x8xf32>
    %119 = arith.truncf %118 : vector<8x8xf32> to vector<8x8xbf16>
    %c0_43 = arith.constant 0 : index
    %c24 = arith.constant 24 : index
    %120 = vector.load %arg15[%c0_43, %c24] : memref<8x32xbf16, #tpu.memory_space<vmem>>, vector<8x8xbf16>
    tpu.vector_store %arg15[%c0_43, %c24], %119 {strides = array<i32>} : memref<8x32xbf16, #tpu.memory_space<vmem>>, vector<8x8xbf16>,
    %c0_44 = arith.constant 0 : index
    %c0_45 = arith.constant 0 : index
    %121 = vector.load %arg14[%c0_44, %c0_45] : memref<8x32xf32, #tpu.memory_space<vmem>>, vector<8x32xf32>
    %c0_46 = arith.constant 0 : index
    %c0_47 = arith.constant 0 : index
    %122 = vector.load %arg15[%c0_46, %c0_47] : memref<8x32xbf16, #tpu.memory_space<vmem>>, vector<8x32xbf16>
    %123 = arith.index_cast %arg1 : i32 to index
    %c0_48 = arith.constant 0 : index
    %c0_49 = arith.constant 0 : index
    %124 = vector.load %arg11[%123, %c0_48, %c0_49] : memref<1x32x32xbf16, #tpu.memory_space<vmem>>, vector<1x32x32xbf16>
    %125 = vector.shape_cast %124 : vector<1x32x32xbf16> to vector<32x32xbf16>
    %cst_50 = arith.constant dense<0.000000e+00> : vector<8x32xf32>
    %126 = tpu.matmul %122, %125, %cst_50 {dimension_numbers = #tpu.dot_dimension_numbers<[1], [0], [0], [1], [0, 0, 1, 1], [], []>} : vector<8x32xbf16>, vector<32x32xbf16>, vector<8x32xf32> -> vector<8x32xf32>
    %127 = arith.addf %121, %126 : vector<8x32xf32>
    %c0_51 = arith.constant 0 : index
    %c0_52 = arith.constant 0 : index
    %128 = vector.load %arg14[%c0_51, %c0_52] : memref<8x32xf32, #tpu.memory_space<vmem>>, vector<8x32xf32>
    tpu.vector_store %arg14[%c0_51, %c0_52], %127 {strides = array<i32>} : memref<8x32xf32, #tpu.memory_space<vmem>>, vector<8x32xf32>,
    %c0_i32_53 = arith.constant 0 : i32
    %129 = arith.cmpi eq, %arg1, %c0_i32_53 : i32
    %130 = arith.extui %129 : i1 to i32
    %c0_i32_54 = arith.constant 0 : i32
    %131 = arith.cmpi ne, %130, %c0_i32_54 : i32
    scf.if %131 {
      %c0_55 = arith.constant 0 : index
      %c0_56 = arith.constant 0 : index
      %132 = vector.load %arg14[%c0_55, %c0_56] : memref<8x32xf32, #tpu.memory_space<vmem>>, vector<8x32xf32>
      %133 = vector.shape_cast %132 : vector<8x32xf32> to vector<1x8x32xf32>
      %c0_57 = arith.constant 0 : index
      %c0_58 = arith.constant 0 : index
      %c0_59 = arith.constant 0 : index
      %134 = vector.load %arg13[%c0_57, %c0_58, %c0_59] : memref<1x8x32xf32, #tpu.memory_space<vmem>>, vector<1x8x32xf32>
      tpu.vector_store %arg13[%c0_57, %c0_58, %c0_59], %133 {strides = array<i32>} : memref<1x8x32xf32, #tpu.memory_space<vmem>>, vector<1x8x32xf32>,
    } else {
    }
    return
  }
  func.func @transform_0(%arg0: i32, %arg1: i32) -> (i32, i32, i32) {
    %c0_i32 = arith.constant 0 : i32
    %c0_i32_0 = arith.constant 0 : i32
    %c0_i32_1 = arith.constant 0 : i32
    return %arg0, %c0_i32, %c0_i32_0 : i32, i32, i32
  }
  func.func @transform_1(%arg0: i32, %arg1: i32) -> (i32, i32, i32) {
    %c0_i32 = arith.constant 0 : i32
    %c0_i32_0 = arith.constant 0 : i32
    %c0_i32_1 = arith.constant 0 : i32
    return %arg0, %c0_i32, %c0_i32_0 : i32, i32, i32
  }
  func.func @transform_2(%arg0: i32, %arg1: i32) -> (i32, i32, i32) {
    %c0_i32 = arith.constant 0 : i32
    %c0_i32_0 = arith.constant 0 : i32
    %c0_i32_1 = arith.constant 0 : i32
    return %arg0, %c0_i32, %c0_i32_0 : i32, i32, i32
  }
  func.func @transform_3(%arg0: i32, %arg1: i32) -> (i32, i32, i32) {
    %c0_i32 = arith.constant 0 : i32
    %c0_i32_0 = arith.constant 0 : i32
    %c0_i32_1 = arith.constant 0 : i32
    %c0_i32_2 = arith.constant 0 : i32
    return %c0_i32, %c0_i32_0, %c0_i32_1 : i32, i32, i32
  }
  func.func @transform_4(%arg0: i32, %arg1: i32) -> (i32, i32, i32) {
    %c0_i32 = arith.constant 0 : i32
    %c0_i32_0 = arith.constant 0 : i32
    %c0_i32_1 = arith.constant 0 : i32
    %c0_i32_2 = arith.constant 0 : i32
    return %c0_i32, %c0_i32_0, %c0_i32_1 : i32, i32, i32
  }
  func.func @transform_5(%arg0: i32, %arg1: i32) -> (i32, i32, i32) {
    %c0_i32 = arith.constant 0 : i32
    %c0_i32_0 = arith.constant 0 : i32
    %c0_i32_1 = arith.constant 0 : i32
    %c0_i32_2 = arith.constant 0 : i32
    return %c0_i32, %c0_i32_0, %c0_i32_1 : i32, i32, i32
  }
  func.func @transform_6(%arg0: i32, %arg1: i32) -> (i32, i32, i32) {
    %c0_i32 = arith.constant 0 : i32
    %c0_i32_0 = arith.constant 0 : i32
    %c0_i32_1 = arith.constant 0 : i32
    %c0_i32_2 = arith.constant 0 : i32
    return %c0_i32, %c0_i32_0, %c0_i32_1 : i32, i32, i32
  }
  func.func @transform_7(%arg0: i32, %arg1: i32) -> (i32, i32, i32) {
    %c0_i32 = arith.constant 0 : i32
    %c0_i32_0 = arith.constant 0 : i32
    %c0_i32_1 = arith.constant 0 : i32
    %c0_i32_2 = arith.constant 0 : i32
    return %c0_i32, %c0_i32_0, %c0_i32_1 : i32, i32, i32
  }
  func.func @transform_8(%arg0: i32, %arg1: i32) -> (i32, i32, i32) {
    %c0_i32 = arith.constant 0 : i32
    %c0_i32_0 = arith.constant 0 : i32
    %c0_i32_1 = arith.constant 0 : i32
    %c0_i32_2 = arith.constant 0 : i32
    return %c0_i32, %c0_i32_0, %c0_i32_1 : i32, i32, i32
  }
  func.func @transform_9(%arg0: i32, %arg1: i32) -> (i32, i32, i32) {
    %c0_i32 = arith.constant 0 : i32
    %c0_i32_0 = arith.constant 0 : i32
    %c0_i32_1 = arith.constant 0 : i32
    %c0_i32_2 = arith.constant 0 : i32
    return %c0_i32, %c0_i32_0, %c0_i32_1 : i32, i32, i32
  }
  func.func @transform_10(%arg0: i32, %arg1: i32) -> (i32, i32) {
    %c0_i32 = arith.constant 0 : i32
    %c0_i32_0 = arith.constant 0 : i32
    %c0_i32_1 = arith.constant 0 : i32
    return %c0_i32, %c0_i32_0 : i32, i32
  }
  func.func @transform_11(%arg0: i32, %arg1: i32) -> (i32, i32, i32) {
    %c0_i32 = arith.constant 0 : i32
    %c0_i32_0 = arith.constant 0 : i32
    %c0_i32_1 = arith.constant 0 : i32
    return %arg0, %c0_i32, %c0_i32_0 : i32, i32, i32
  }
}

</mosaic_0001>

<llo_original>
// kernel: tpu_custom_call.1
$region0: #{tpu_custom_call.1}
  #allocation0 [shape = 'u32[]', space=smem, size = 0x4, offset = 0x4, fixed_abs, tag = 'smem constant byte address 0x4 - core index']
  #allocation1 [shape = 'u32[144,128]{1,0:T(1,128)}', space=vmem, size = 0x12000, scoped, tag = 'internal scratch']
  #allocation2 [shape = 'f32[8,32]{1,0:T(8,128)}', space=vmem, size = 0x1000, scoped, tag = 'scratch operand']
  #allocation3 [shape = 'bf16[8,32]{1,0:T(8,128)(2,1)}', space=vmem, size = 0x800, scoped, tag = 'scratch operand']
  %s0 = inlined_call_operand.hbm [shape: f32[2,8,32], index: 0, kind: input, shape index: {}]
  %s1 = inlined_call_operand.hbm [shape: f32[2,8,32], index: 1, kind: input, shape index: {}]
  %s2 = inlined_call_operand.hbm [shape: f32[2,8,32], index: 2, kind: input, shape index: {}]
  %s3 = inlined_call_operand.hbm [shape: bf16[1,32,32], index: 3, kind: input, shape index: {}]
  %s4 = inlined_call_operand.hbm [shape: bf16[1,32,32], index: 4, kind: input, shape index: {}]
  %s5 = inlined_call_operand.vmem [shape: bf16[1,32,32], index: 5, kind: input, shape index: {}]
  %s6 = inlined_call_operand.vmem [shape: f32[1,1,32], index: 6, kind: input, shape index: {}]
  %s7 = inlined_call_operand.vmem [shape: f32[1,1,32], index: 7, kind: input, shape index: {}]
  %s8 = inlined_call_operand.hbm [shape: f32[1,1,32], index: 8, kind: input, shape index: {}]
  %s9 = inlined_call_operand.vmem [shape: bf16[1,32,32], index: 9, kind: input, shape index: {}]
  %s10 = inlined_call_operand.vmem [shape: f32[1,32], index: 10, kind: input, shape index: {}]
  %s11 = inlined_call_operand.hbm [shape: f32[2,8,32], index: 11, kind: output, shape index: {}]
  %s12 = sld [smem:[#allocation0]]
  $region109: #{tpu_custom_call.1} parent=0
    _
  %s14 = ssub.s32 1, %s12
  %s15 = scalar_select 0, %s14, %s12
  $region1: #{tpu_custom_call.1} parent=0
    #allocation4 [shape = 'u8[8192]{0}', space=vmem, size = 0x2000, scoped, tag = 'input window, operand 0']
    #allocation5 [shape = 's32[2]{0}', space=sflag, size = 0x8, scoped, tag = 'scoped memory for tpu_custom_call.1']
    #allocation6 [shape = 's32[2]{0}', space=sflag, size = 0x8, scoped, tag = 'scoped memory for tpu_custom_call.1']
    #allocation7 [shape = 'u8[8192]{0}', space=vmem, size = 0x2000, scoped, tag = 'input window, operand 1']
    #allocation8 [shape = 's32[2]{0}', space=sflag, size = 0x8, scoped, tag = 'scoped memory for tpu_custom_call.1']
    #allocation9 [shape = 'u8[8192]{0}', space=vmem, size = 0x2000, scoped, tag = 'input window, operand 2']
    #allocation10 [shape = 'u8[8192]{0}', space=vmem, size = 0x2000, scoped, tag = 'input window, operand 3, single buffered']
    #allocation11 [shape = 's32[1]{0}', space=sflag, size = 0x4, scoped, tag = 'scoped memory for tpu_custom_call.1']
    #allocation12 [shape = 'u8[8192]{0}', space=vmem, size = 0x2000, scoped, tag = 'input window, operand 4, single buffered']
    #allocation13 [shape = 'u8[512]{0}', space=vmem, size = 0x400, scoped, tag = 'input window, operand 8, single buffered']
    #allocation14 [shape = 's32[1]{0}', space=sflag, size = 0x4, scoped, tag = 'scoped memory for tpu_custom_call.1']
    #allocation15 [shape = 'u8[8192]{0}', space=vmem, size = 0x2000, scoped, tag = 'output window, operand 0']
    %16 = vsyncpa [#allocation5], 0
    %s17 = scalar_lea.sflag [#allocation5], 1
    %18 = vsyncpa %s17, 0
    %19 = vsyncpa [#allocation8], 0
    %s20 = scalar_lea.sflag [#allocation8], 1
    %21 = vsyncpa %s20, 0
    %22 = vsyncpa [#allocation11], 0
    %23 = vsyncpa [#allocation14], 0
    %24 = vsyncpa [#allocation6], 0
    %s25 = scalar_lea.sflag [#allocation6], 1
    %26 = vsyncpa %s25, 0
    loop: start=0, step=1, limit=4
    $region2: #{tpu_custom_call.1} parent=1 // loop_pre_header
      _
    $region3: #{tpu_custom_call.1} parent=1 // loop_header
      %s28 = sphi 0, %s32
      %p29 = scmp.ge.s32.totalorder %s28, 4
      %s35 = sphi 0, %s47
      %s36 = sphi 0, %s43
      %s37 = sphi 0, %s35
      %s38 = sphi 0, %s36
      %s39 = sphi 0, %s37
      %s40 = sphi 0, %s38
      %s50 = sphi 0, %s52
      %s53 = sphi 0, %s50
      %s54 = sphi 0, %s53
      %s70 = sphi 0, %s54
      %s76 = sphi 0, %s78
      %s79 = sphi 0, %s76
      %s80 = sphi 0, %s79
      %s96 = sphi 0, %s80
      %s102 = sphi 0, %s104
      %s105 = sphi 0, %s102
      %s106 = sphi 0, %s105
      %s122 = sphi 0, %s106
      %s126 = sphi 0, %s126
      %s128 = sphi 0, %s126
      %s129 = sphi 0, %s128
      %s143 = sphi 0, %s129
      %s147 = sphi 0, %s147
      %s149 = sphi 0, %s147
      %s150 = sphi 0, %s149
      %s164 = sphi 0, %s150
      %s168 = sphi 0, %s168
      %s170 = sphi 0, %s168
      %s171 = sphi 0, %s170
      %s185 = sphi 0, %s171
      %s189 = sphi 0, %s189
      %s191 = sphi 0, %s189
      %s192 = sphi 0, %s191
      %s206 = sphi 0, %s192
      %s210 = sphi 0, %s210
      %s212 = sphi 0, %s210
      %s213 = sphi 0, %s212
      %s227 = sphi 0, %s213
      %s231 = sphi 0, %s231
      %s233 = sphi 0, %s231
      %s234 = sphi 0, %s233
      %s248 = sphi 0, %s234
      %s252 = sphi 0, %s252
      %s254 = sphi 0, %s252
      %s255 = sphi 0, %s254
      %s269 = sphi 0, %s255
      %s273 = sphi 0, %s273
      %s275 = sphi 0, %s273
      %s276 = sphi 0, %s275
      %s290 = sphi 0, %s276
      %s296 = sphi 0, %s298
      %s299 = sphi 0, %s296
      %s300 = sphi 0, %s299
      %s316 = sphi 0, %s300
    $region4: #{tpu_custom_call.1} parent=1 // loop_header_branch
      %31 = sbr.rel (%p29) target = $region8
    $region5: #{tpu_custom_call.1} parent=1 // loop_body
      %s33 = ssub.s32 %s28, 1
      %s34 = ssub.s32 %s28, 2
      %s41 = sadd.s32 1, %s36
      %p42 = scmp.ge.s32.totalorder %s41, 1
      %s43 = scalar_select %p42, 0, %s41
      %s44 = sadd.s32 1, %s35
      %s45 = scalar_select %p42, %s44, %s35
      %p46 = scmp.ge.s32.totalorder %s45, 2
      %s47 = scalar_select %p46, 0, %s45
      %s48 = ssub.s32 %s35, %s47
      %p49 = scmp.eq.s32.totalorder %s48, 0
      %s51 = sadd.s32 %s50, 1
      %s52 = scalar_select %p49, %s50, %s51
      %p55 = pneg %p49
      %p56 = scmp.eq.s32.totalorder %s28, 1
      %p57 = por %p55, %p56
      %p58 = scmp.ne.s32.totalorder %s50, %s53
      %p59 = scmp.eq.s32.totalorder %s28, 0
      %p60 = por %p58, %p59
      %p61 = scmp.ne.s32.totalorder %s50, %s53
      %p62 = scmp.eq.s32.totalorder %s33, 1
      %p63 = por %p61, %p62
      %p64 = scmp.ne.s32.totalorder %s53, %s54
      %p65 = scmp.eq.s32.totalorder %s33, 0
      %p66 = por %p64, %p65
      %p67 = scmp.ne.s32.totalorder %s53, %s54
      %p68 = scmp.eq.s32.totalorder %s34, 1
      %p69 = por %p67, %p68
      %p71 = scmp.ne.s32.totalorder %s54, %s70
      %p72 = scmp.eq.s32.totalorder %s34, 0
      %p73 = por %p71, %p72
      %s74 = ssub.s32 %s35, %s47
      %p75 = scmp.eq.s32.totalorder %s74, 0
      %s77 = sadd.s32 %s76, 1
      %s78 = scalar_select %p75, %s76, %s77
      %p81 = pneg %p75
      %p82 = scmp.eq.s32.totalorder %s28, 1
      %p83 = por %p81, %p82
      %p84 = scmp.ne.s32.totalorder %s76, %s79
      %p85 = scmp.eq.s32.totalorder %s28, 0
      %p86 = por %p84, %p85
      %p87 = scmp.ne.s32.totalorder %s76, %s79
      %p88 = scmp.eq.s32.totalorder %s33, 1
      %p89 = por %p87, %p88
      %p90 = scmp.ne.s32.totalorder %s79, %s80
      %p91 = scmp.eq.s32.totalorder %s33, 0
      %p92 = por %p90, %p91
      %p93 = scmp.ne.s32.totalorder %s79, %s80
      %p94 = scmp.eq.s32.totalorder %s34, 1
      %p95 = por %p93, %p94
      %p97 = scmp.ne.s32.totalorder %s80, %s96
      %p98 = scmp.eq.s32.totalorder %s34, 0
      %p99 = por %p97, %p98
      %s100 = ssub.s32 %s35, %s47
      %p101 = scmp.eq.s32.totalorder %s100, 0
      %s103 = sadd.s32 %s102, 1
      %s104 = scalar_select %p101, %s102, %s103
      %p107 = pneg %p101
      %p108 = scmp.eq.s32.totalorder %s28, 1
      %p109 = por %p107, %p108
      %p110 = scmp.ne.s32.totalorder %s102, %s105
      %p111 = scmp.eq.s32.totalorder %s28, 0
      %p112 = por %p110, %p111
      %p113 = scmp.ne.s32.totalorder %s102, %s105
      %p114 = scmp.eq.s32.totalorder %s33, 1
      %p115 = por %p113, %p114
      %p116 = scmp.ne.s32.totalorder %s105, %s106
      %p117 = scmp.eq.s32.totalorder %s33, 0
      %p118 = por %p116, %p117
      %p119 = scmp.ne.s32.totalorder %s105, %s106
      %p120 = scmp.eq.s32.totalorder %s34, 1
      %p121 = por %p119, %p120
      %p123 = scmp.ne.s32.totalorder %s106, %s122
      %p124 = scmp.eq.s32.totalorder %s34, 0
      %p125 = por %p123, %p124
      %s127 = sadd.s32 %s126, 1
      %p130 = scmp.eq.s32.totalorder %s28, 1
      %p131 = scmp.ne.s32.totalorder %s126, %s128
      %p132 = scmp.eq.s32.totalorder %s28, 0
      %p133 = por %p131, %p132
      %p134 = scmp.ne.s32.totalorder %s126, %s128
      %p135 = scmp.eq.s32.totalorder %s33, 1
      %p136 = por %p134, %p135
      %p137 = scmp.ne.s32.totalorder %s128, %s129
      %p138 = scmp.eq.s32.totalorder %s33, 0
      %p139 = por %p137, %p138
      %p140 = scmp.ne.s32.totalorder %s128, %s129
      %p141 = scmp.eq.s32.totalorder %s34, 1
      %p142 = por %p140, %p141
      %p144 = scmp.ne.s32.totalorder %s129, %s143
      %p145 = scmp.eq.s32.totalorder %s34, 0
      %p146 = por %p144, %p145
      %s148 = sadd.s32 %s147, 1
      %p151 = scmp.eq.s32.totalorder %s28, 1
      %p152 = scmp.ne.s32.totalorder %s147, %s149
      %p153 = scmp.eq.s32.totalorder %s28, 0
      %p154 = por %p152, %p153
      %p155 = scmp.ne.s32.totalorder %s147, %s149
      %p156 = scmp.eq.s32.totalorder %s33, 1
      %p157 = por %p155, %p156
      %p158 = scmp.ne.s32.totalorder %s149, %s150
      %p159 = scmp.eq.s32.totalorder %s33, 0
      %p160 = por %p158, %p159
      %p161 = scmp.ne.s32.totalorder %s149, %s150
      %p162 = scmp.eq.s32.totalorder %s34, 1
      %p163 = por %p161, %p162
      %p165 = scmp.ne.s32.totalorder %s150, %s164
      %p166 = scmp.eq.s32.totalorder %s34, 0
      %p167 = por %p165, %p166
      %s169 = sadd.s32 %s168, 1
      %p172 = scmp.eq.s32.totalorder %s28, 1
      %p173 = scmp.ne.s32.totalorder %s168, %s170
      %p174 = scmp.eq.s32.totalorder %s28, 0
      %p175 = por %p173, %p174
      %p176 = scmp.ne.s32.totalorder %s168, %s170
      %p177 = scmp.eq.s32.totalorder %s33, 1
      %p178 = por %p176, %p177
      %p179 = scmp.ne.s32.totalorder %s170, %s171
      %p180 = scmp.eq.s32.totalorder %s33, 0
      %p181 = por %p179, %p180
      %p182 = scmp.ne.s32.totalorder %s170, %s171
      %p183 = scmp.eq.s32.totalorder %s34, 1
      %p184 = por %p182, %p183
      %p186 = scmp.ne.s32.totalorder %s171, %s185
      %p187 = scmp.eq.s32.totalorder %s34, 0
      %p188 = por %p186, %p187
      %s190 = sadd.s32 %s189, 1
      %p193 = scmp.eq.s32.totalorder %s28, 1
      %p194 = scmp.ne.s32.totalorder %s189, %s191
      %p195 = scmp.eq.s32.totalorder %s28, 0
      %p196 = por %p194, %p195
      %p197 = scmp.ne.s32.totalorder %s189, %s191
      %p198 = scmp.eq.s32.totalorder %s33, 1
      %p199 = por %p197, %p198
      %p200 = scmp.ne.s32.totalorder %s191, %s192
      %p201 = scmp.eq.s32.totalorder %s33, 0
      %p202 = por %p200, %p201
      %p203 = scmp.ne.s32.totalorder %s191, %s192
      %p204 = scmp.eq.s32.totalorder %s34, 1
      %p205 = por %p203, %p204
      %p207 = scmp.ne.s32.totalorder %s192, %s206
      %p208 = scmp.eq.s32.totalorder %s34, 0
      %p209 = por %p207, %p208
      %s211 = sadd.s32 %s210, 1
      %p214 = scmp.eq.s32.totalorder %s28, 1
      %p215 = scmp.ne.s32.totalorder %s210, %s212
      %p216 = scmp.eq.s32.totalorder %s28, 0
      %p217 = por %p215, %p216
      %p218 = scmp.ne.s32.totalorder %s210, %s212
      %p219 = scmp.eq.s32.totalorder %s33, 1
      %p220 = por %p218, %p219
      %p221 = scmp.ne.s32.totalorder %s212, %s213
      %p222 = scmp.eq.s32.totalorder %s33, 0
      %p223 = por %p221, %p222
      %p224 = scmp.ne.s32.totalorder %s212, %s213
      %p225 = scmp.eq.s32.totalorder %s34, 1
      %p226 = por %p224, %p225
      %p228 = scmp.ne.s32.totalorder %s213, %s227
      %p229 = scmp.eq.s32.totalorder %s34, 0
      %p230 = por %p228, %p229
      %s232 = sadd.s32 %s231, 1
      %p235 = scmp.eq.s32.totalorder %s28, 1
      %p236 = scmp.ne.s32.totalorder %s231, %s233
      %p237 = scmp.eq.s32.totalorder %s28, 0
      %p238 = por %p236, %p237
      %p239 = scmp.ne.s32.totalorder %s231, %s233
      %p240 = scmp.eq.s32.totalorder %s33, 1
      %p241 = por %p239, %p240
      %p242 = scmp.ne.s32.totalorder %s233, %s234
      %p243 = scmp.eq.s32.totalorder %s33, 0
      %p244 = por %p242, %p243
      %p245 = scmp.ne.s32.totalorder %s233, %s234
      %p246 = scmp.eq.s32.totalorder %s34, 1
      %p247 = por %p245, %p246
      %p249 = scmp.ne.s32.totalorder %s234, %s248
      %p250 = scmp.eq.s32.totalorder %s34, 0
      %p251 = por %p249, %p250
      %s253 = sadd.s32 %s252, 1
      %p256 = scmp.eq.s32.totalorder %s28, 1
      %p257 = scmp.ne.s32.totalorder %s252, %s254
      %p258 = scmp.eq.s32.totalorder %s28, 0
      %p259 = por %p257, %p258
      %p260 = scmp.ne.s32.totalorder %s252, %s254
      %p261 = scmp.eq.s32.totalorder %s33, 1
      %p262 = por %p260, %p261
      %p263 = scmp.ne.s32.totalorder %s254, %s255
      %p264 = scmp.eq.s32.totalorder %s33, 0
      %p265 = por %p263, %p264
      %p266 = scmp.ne.s32.totalorder %s254, %s255
      %p267 = scmp.eq.s32.totalorder %s34, 1
      %p268 = por %p266, %p267
      %p270 = scmp.ne.s32.totalorder %s255, %s269
      %p271 = scmp.eq.s32.totalorder %s34, 0
      %p272 = por %p270, %p271
      %s274 = sadd.s32 %s273, 1
      %p277 = scmp.eq.s32.totalorder %s28, 1
      %p278 = scmp.ne.s32.totalorder %s273, %s275
      %p279 = scmp.eq.s32.totalorder %s28, 0
      %p280 = por %p278, %p279
      %p281 = scmp.ne.s32.totalorder %s273, %s275
      %p282 = scmp.eq.s32.totalorder %s33, 1
      %p283 = por %p281, %p282
      %p284 = scmp.ne.s32.totalorder %s275, %s276
      %p285 = scmp.eq.s32.totalorder %s33, 0
      %p286 = por %p284, %p285
      %p287 = scmp.ne.s32.totalorder %s275, %s276
      %p288 = scmp.eq.s32.totalorder %s34, 1
      %p289 = por %p287, %p288
      %p291 = scmp.ne.s32.totalorder %s276, %s290
      %p292 = scmp.eq.s32.totalorder %s34, 0
      %p293 = por %p291, %p292
      %s294 = ssub.s32 %s35, %s47
      %p295 = scmp.eq.s32.totalorder %s294, 0
      %s297 = sadd.s32 %s296, 1
      %s298 = scalar_select %p295, %s296, %s297
      %p301 = pneg %p295
      %p302 = scmp.eq.s32.totalorder %s28, 1
      %p303 = por %p301, %p302
      %p304 = scmp.ne.s32.totalorder %s296, %s299
      %p305 = scmp.eq.s32.totalorder %s28, 0
      %p306 = por %p304, %p305
      %p307 = scmp.ne.s32.totalorder %s296, %s299
      %p308 = scmp.eq.s32.totalorder %s33, 1
      %p309 = por %p307, %p308
      %p310 = scmp.ne.s32.totalorder %s299, %s300
      %p311 = scmp.eq.s32.totalorder %s33, 0
      %p312 = por %p310, %p311
      %p313 = scmp.ne.s32.totalorder %s299, %s300
      %p314 = scmp.eq.s32.totalorder %s34, 1
      %p315 = por %p313, %p314
      %p317 = scmp.ne.s32.totalorder %s300, %s316
      %p318 = scmp.eq.s32.totalorder %s34, 0
      %p319 = por %p317, %p318
      %p320 = scmp.le.s32.totalorder 1, %s28
      %p321 = scmp.lt.s32.totalorder %s28, 3
      %p322 = pnand %p320, %p321
      %p323 = pneg %p322
      // Predicated region
      $region9: #{tpu_custom_call.1} parent=5 // pred_check
        _
      $region10: #{tpu_custom_call.1} parent=5 // pred_check_branch
        %325 = sbr.rel (%p322) target = $region12
      $region11: #{tpu_custom_call.1} parent=5 // pred_region
        %s326 = ssub.s32 %s28, 1
        // Predicated region
        $region13: #{tpu_custom_call.1} parent=11 // pred_check
          %p327 = pneg %p139
        $region14: #{tpu_custom_call.1} parent=11 // pred_check_branch
          %329 = sbr.rel (%p327) target = $region16
        $region15: #{tpu_custom_call.1} parent=11 // pred_region
          %s331 = ssub.s32 256, 256
          %332 = vsyncadd [#allocation11], %s331
          %s333 = sshll.u32 [#allocation10], 4
          %s334 = int_to_ptr.vmem [resolvable:$true] %s333
          %339 = dma.hbm_to_vmem [thread:$0]  %s3, 256, %s334, [#allocation11], 64, 64, 4
        $region16: #{tpu_custom_call.1} parent=11 // pred_fallthru
          _
        // Predicated region
        $region17: #{tpu_custom_call.1} parent=11 // pred_check
          %p340 = pneg %p160
        $region18: #{tpu_custom_call.1} parent=11 // pred_check_branch
          %342 = sbr.rel (%p340) target = $region20
        $region19: #{tpu_custom_call.1} parent=11 // pred_region
          %s344 = ssub.s32 256, 256
          %345 = vsyncadd [#allocation11], %s344
          %s346 = sshll.u32 [#allocation12], 4
          %s347 = int_to_ptr.vmem [resolvable:$true] %s346
          %352 = dma.hbm_to_vmem [thread:$0]  %s4, 256, %s347, [#allocation11], 64, 64, 4
        $region20: #{tpu_custom_call.1} parent=11 // pred_fallthru
          _
        // Predicated region
        $region21: #{tpu_custom_call.1} parent=11 // pred_check
          %p353 = pneg %p181
        $region22: #{tpu_custom_call.1} parent=11 // pred_check_branch
          %355 = sbr.rel (%p353) target = $region24
        $region23: #{tpu_custom_call.1} parent=11 // pred_region
          _
        $region24: #{tpu_custom_call.1} parent=11 // pred_fallthru
          _
        // Predicated region
        $region25: #{tpu_custom_call.1} parent=11 // pred_check
          %p356 = pneg %p202
        $region26: #{tpu_custom_call.1} parent=11 // pred_check_branch
          %358 = sbr.rel (%p356) target = $region28
        $region27: #{tpu_custom_call.1} parent=11 // pred_region
          _
        $region28: #{tpu_custom_call.1} parent=11 // pred_fallthru
          _
        // Predicated region
        $region29: #{tpu_custom_call.1} parent=11 // pred_check
          %p359 = pneg %p223
        $region30: #{tpu_custom_call.1} parent=11 // pred_check_branch
          %361 = sbr.rel (%p359) target = $region32
        $region31: #{tpu_custom_call.1} parent=11 // pred_region
          _
        $region32: #{tpu_custom_call.1} parent=11 // pred_fallthru
          _
        // Predicated region
        $region33: #{tpu_custom_call.1} parent=11 // pred_check
          %p362 = pneg %p244
        $region34: #{tpu_custom_call.1} parent=11 // pred_check_branch
          %364 = sbr.rel (%p362) target = $region36
        $region35: #{tpu_custom_call.1} parent=11 // pred_region
          %s366 = ssub.s32 16, 16
          %367 = vsyncadd [#allocation14], %s366
          %s369 = sshll.u32 [#allocation13], 4
          %s370 = int_to_ptr.vmem [resolvable:$true] %s369
          %372 = dma.hbm_to_vmem [thread:$0]  %s8, 16, %s370, [#allocation14]
        $region36: #{tpu_custom_call.1} parent=11 // pred_fallthru
          _
        // Predicated region
        $region37: #{tpu_custom_call.1} parent=11 // pred_check
          %p373 = pneg %p265
        $region38: #{tpu_custom_call.1} parent=11 // pred_check_branch
          %375 = sbr.rel (%p373) target = $region40
        $region39: #{tpu_custom_call.1} parent=11 // pred_region
          _
        $region40: #{tpu_custom_call.1} parent=11 // pred_fallthru
          _
        // Predicated region
        $region41: #{tpu_custom_call.1} parent=11 // pred_check
          %p376 = pneg %p286
        $region42: #{tpu_custom_call.1} parent=11 // pred_check_branch
          %378 = sbr.rel (%p376) target = $region44
        $region43: #{tpu_custom_call.1} parent=11 // pred_region
          _
        $region44: #{tpu_custom_call.1} parent=11 // pred_fallthru
          _
      $region12: #{tpu_custom_call.1} parent=5 // pred_fallthru
        _
      %p379 = scmp.lt.s32.totalorder %s28, 2
      // Predicated region
      $region45: #{tpu_custom_call.1} parent=5 // pred_check
        %p380 = pneg %p379
      $region46: #{tpu_custom_call.1} parent=5 // pred_check_branch
        %382 = sbr.rel (%p380) target = $region48
      $region47: #{tpu_custom_call.1} parent=5 // pred_region
        // Predicated region
        $region49: #{tpu_custom_call.1} parent=47 // pred_check
          %p383 = pneg %p60
        $region50: #{tpu_custom_call.1} parent=47 // pred_check_branch
          %385 = sbr.rel (%p383) target = $region52
        $region51: #{tpu_custom_call.1} parent=47 // pred_region
          %s386 = sand.u32 %s50, 1
          %s387 = scalar_lea.sflag [#allocation5], %s386
          %s388 = sand.u32 %s50, 1
          %s389 = smul.addr %s388, 8
          %s390 = scalar_lea.vmem [#allocation4], %s389
          %s392 = ssub.s32 128, 128
          %393 = vsyncadd %s387, %s392
          %s394 = smul.addr %s35, 128
          %s395 = scalar_lea.hbm %s0, %s394
          %s397 = sshll.u32 %s390, 4
          %s398 = int_to_ptr.vmem [resolvable:$true] %s397
          %400 = dma.hbm_to_vmem [thread:$0]  %s395, 128, %s398, %s387
        $region52: #{tpu_custom_call.1} parent=47 // pred_fallthru
          _
        // Predicated region
        $region53: #{tpu_custom_call.1} parent=47 // pred_check
          %p401 = pneg %p86
        $region54: #{tpu_custom_call.1} parent=47 // pred_check_branch
          %403 = sbr.rel (%p401) target = $region56
        $region55: #{tpu_custom_call.1} parent=47 // pred_region
          %s404 = sand.u32 %s28, 1
          %s405 = scalar_lea.sflag [#allocation8], %s404
          %s406 = sand.u32 %s76, 1
          %s407 = smul.addr %s406, 8
          %s408 = scalar_lea.vmem [#allocation7], %s407
          %s410 = ssub.s32 128, 128
          %411 = vsyncadd %s405, %s410
          %s412 = smul.addr %s35, 128
          %s413 = scalar_lea.hbm %s1, %s412
          %s415 = sshll.u32 %s408, 4
          %s416 = int_to_ptr.vmem [resolvable:$true] %s415
          %418 = dma.hbm_to_vmem [thread:$0]  %s413, 128, %s416, %s405
        $region56: #{tpu_custom_call.1} parent=47 // pred_fallthru
          _
        // Predicated region
        $region57: #{tpu_custom_call.1} parent=47 // pred_check
          %p419 = pneg %p112
        $region58: #{tpu_custom_call.1} parent=47 // pred_check_branch
          %421 = sbr.rel (%p419) target = $region60
        $region59: #{tpu_custom_call.1} parent=47 // pred_region
          %s422 = sand.u32 %s28, 1
          %s423 = scalar_lea.sflag [#allocation8], %s422
          %s424 = sand.u32 %s102, 1
          %s425 = smul.addr %s424, 8
          %s426 = scalar_lea.vmem [#allocation9], %s425
          %s428 = ssub.s32 128, 128
          %429 = vsyncadd %s423, %s428
          %s430 = smul.addr %s35, 128
          %s431 = scalar_lea.hbm %s2, %s430
          %s433 = sshll.u32 %s426, 4
          %s434 = int_to_ptr.vmem [resolvable:$true] %s433
          %436 = dma.hbm_to_vmem [thread:$0]  %s431, 128, %s434, %s423
        $region60: #{tpu_custom_call.1} parent=47 // pred_fallthru
          _
      $region48: #{tpu_custom_call.1} parent=5 // pred_fallthru
        _
      %p437 = scmp.le.s32.totalorder 1, %s28
      %p438 = scmp.lt.s32.totalorder %s28, 3
      %p439 = pnand %p437, %p438
      %p440 = pneg %p439
      // Predicated region
      $region61: #{tpu_custom_call.1} parent=5 // pred_check
        _
      $region62: #{tpu_custom_call.1} parent=5 // pred_check_branch
        %442 = sbr.rel (%p439) target = $region64
      $region63: #{tpu_custom_call.1} parent=5 // pred_region
        %s443 = ssub.s32 %s28, 1
        %s444 = sand.u32 %s53, 1
        %s445 = scalar_lea.sflag [#allocation5], %s444
        %s446 = sand.u32 %s53, 1
        %s447 = smul.addr %s446, 8
        %s448 = scalar_lea.vmem [#allocation4], %s447
        // Predicated region
        $region65: #{tpu_custom_call.1} parent=63 // pred_check
          %p449 = pneg %p66
        $region66: #{tpu_custom_call.1} parent=63 // pred_check_branch
          %451 = sbr.rel (%p449) target = $region68
        $region67: #{tpu_custom_call.1} parent=63 // pred_region
          %452 = dma.done %s445, 128
        $region68: #{tpu_custom_call.1} parent=63 // pred_fallthru
          _
        %s453 = sand.u32 %s33, 1
        %s454 = scalar_lea.sflag [#allocation8], %s453
        %s455 = sand.u32 %s79, 1
        %s456 = smul.addr %s455, 8
        %s457 = scalar_lea.vmem [#allocation7], %s456
        // Predicated region
        $region69: #{tpu_custom_call.1} parent=63 // pred_check
          %p458 = pneg %p92
        $region70: #{tpu_custom_call.1} parent=63 // pred_check_branch
          %460 = sbr.rel (%p458) target = $region72
        $region71: #{tpu_custom_call.1} parent=63 // pred_region
          %461 = dma.done %s454, 128
        $region72: #{tpu_custom_call.1} parent=63 // pred_fallthru
          _
        %s462 = sand.u32 %s33, 1
        %s463 = scalar_lea.sflag [#allocation8], %s462
        %s464 = sand.u32 %s105, 1
        %s465 = smul.addr %s464, 8
        %s466 = scalar_lea.vmem [#allocation9], %s465
        // Predicated region
        $region73: #{tpu_custom_call.1} parent=63 // pred_check
          %p467 = pneg %p118
        $region74: #{tpu_custom_call.1} parent=63 // pred_check_branch
          %469 = sbr.rel (%p467) target = $region76
        $region75: #{tpu_custom_call.1} parent=63 // pred_region
          %470 = dma.done %s463, 128
        $region76: #{tpu_custom_call.1} parent=63 // pred_fallthru
          _
        // Predicated region
        $region77: #{tpu_custom_call.1} parent=63 // pred_check
          %p471 = pneg %p139
        $region78: #{tpu_custom_call.1} parent=63 // pred_check_branch
          %473 = sbr.rel (%p471) target = $region80
        $region79: #{tpu_custom_call.1} parent=63 // pred_region
          %474 = dma.done [#allocation11], 256
        $region80: #{tpu_custom_call.1} parent=63 // pred_fallthru
          _
        // Predicated region
        $region81: #{tpu_custom_call.1} parent=63 // pred_check
          %p475 = pneg %p160
        $region82: #{tpu_custom_call.1} parent=63 // pred_check_branch
          %477 = sbr.rel (%p475) target = $region84
        $region83: #{tpu_custom_call.1} parent=63 // pred_region
          %478 = dma.done [#allocation11], 256
        $region84: #{tpu_custom_call.1} parent=63 // pred_fallthru
          _
        // Predicated region
        $region85: #{tpu_custom_call.1} parent=63 // pred_check
          %p479 = pneg %p244
        $region86: #{tpu_custom_call.1} parent=63 // pred_check_branch
          %481 = sbr.rel (%p479) target = $region88
        $region87: #{tpu_custom_call.1} parent=63 // pred_region
          %482 = dma.done [#allocation14], 16
        $region88: #{tpu_custom_call.1} parent=63 // pred_fallthru
          _
        %s483 = sand.u32 %s53, 1
        %s484 = scalar_lea.sflag [#allocation5], %s483
        %s485 = sand.u32 %s53, 1
        %s486 = smul.addr %s485, 8
        %s487 = scalar_lea.vmem [#allocation4], %s486
        %p488 = pneg %p66
        %p489 = pneg %p63
        %s490 = sand.u32 %s33, 1
        %s491 = scalar_lea.sflag [#allocation8], %s490
        %s492 = sand.u32 %s79, 1
        %s493 = smul.addr %s492, 8
        %s494 = scalar_lea.vmem [#allocation7], %s493
        %p495 = pneg %p92
        %p496 = pneg %p89
        %s497 = sand.u32 %s33, 1
        %s498 = scalar_lea.sflag [#allocation8], %s497
        %s499 = sand.u32 %s105, 1
        %s500 = smul.addr %s499, 8
        %s501 = scalar_lea.vmem [#allocation9], %s500
        %p502 = pneg %p118
        %p503 = pneg %p115
        %p504 = pneg %p139
        %p505 = pneg %p136
        %p506 = pneg %p160
        %p507 = pneg %p157
        %p508 = pneg %p181
        %p509 = pneg %p178
        %p510 = pneg %p202
        %p511 = pneg %p199
        %p512 = pneg %p223
        %p513 = pneg %p220
        %p514 = pneg %p244
        %p515 = pneg %p241
        %p516 = pneg %p265
        %p517 = pneg %p262
        %p518 = pneg %p286
        %p519 = pneg %p283
        %p520 = pneg %p312
        %p521 = pneg %p309
        %s522 = sand.u32 %s299, 1
        %s523 = scalar_lea.sflag [#allocation6], %s522
        %s524 = sand.u32 %s299, 1
        %s525 = smul.addr %s524, 8
        %s526 = scalar_lea.vmem [#allocation15], %s525
        %p528 = scmp.eq.s32.totalorder %s38, 0
        // Predicated region
        $region89: #{tpu_custom_call.1} parent=63 // pred_check
          %p529 = pneg %p528
        $region90: #{tpu_custom_call.1} parent=63 // pred_check_branch
          %531 = sbr.rel (%p529) target = $region92
        $region91: #{tpu_custom_call.1} parent=63 // pred_region
          %v532 = vld [vmem:[%s10] sm:$0x1]
          %v534 = vlaneseq
          %v535 = vshrl.u32 %v534, 7
          %v536 = vsub.s32 0, %v535
          %v537 = vrot.slane %v532, %v536
          %vm539 = vcmask 261120
          %540 = vst.msk [vmem:[#allocation2] sm:$0xff] %vm539, %v537
        $region92: #{tpu_custom_call.1} parent=63 // pred_fallthru
          _
        %v541 = vld [vmem:[%s448] sm:$0xff]
        %v542 = vpack.c.bf16 %v541, %v541
        %v543 = vld [vmem:[%s457] sm:$0xff]
        %v544 = vpack.c.bf16 %v543, %v543
        %v545 = vld [vmem:[%s466] sm:$0xff]
        %v546 = vpack.c.bf16 %v545, %v545
        %s547 = smul.u32 %s38, 4
        %s548 = smul.addr %s547, 4
        %s549 = scalar_lea.vmem [#allocation10], %s548
        %v550 = vld [vmem:[%s549] sm:$0xf]
        %v551 = vld [vmem:[%s549 + $0x4] sm:$0xf]
        %v552 = vld [vmem:[%s549 + $0x8] sm:$0xf]
        %v553 = vld [vmem:[%s549 + $0xc] sm:$0xf]
        %s554 = scalar_lea.vmem %s6, %s38
        %v555 = vld [vmem:[%s554] sm:$0x1]
        %v557 = vlaneseq
        %v558 = vshrl.u32 %v557, 7
        %v559 = vsub.s32 0, %v558
        %v560 = vrot.slane %v555, %v559
        %v566 = vunpack.c.l.b16 %v550
        %v567 = vunpack.c.l.b16 %v551
        %v568 = vunpack.c.l.b16 %v552
        %v569 = vunpack.c.l.b16 %v553
        %v570 = vpack.c.b16 %v567, %v566
        %v571 = vpack.c.b16 %v569, %v568
        %vm574 = vcmask 261120
        %v576 = vsel %vm574, %v542, 0
        %578 = vmatprep.subr.bf16.mxu0 0
        %579 = vmatpush1.bf16.msra.mxu0 %v570
        %580 = vmatprep.subr.bf16.mxu0 0
        %581 = vmatpush1.bf16.msra.mxu0 %v571
        %582 = vmatprep.subr.bf16.mxu0 0
        %583 = vmatpush1.bf16.msra.mxu0 0
        %584 = vmatprep.subr.bf16.mxu0 0
        %585 = vmatpush1.bf16.msra.mxu0 0
        %586 = vmatprep.subr.bf16.mxu0 0
        %587 = vmatpush1.bf16.msra.mxu0 0
        %588 = vmatprep.subr.bf16.mxu0 0
        %589 = vmatpush1.bf16.msra.mxu0 0
        %590 = vmatprep.subr.bf16.mxu0 0
        %591 = vmatpush1.bf16.msra.mxu0 0
        %592 = vmatprep.subr.bf16.mxu0 0
        %593 = vmatpush1.bf16.msra.mxu0 0
        %594 = vmatprep.subr.bf16.mxu0 0
        %595 = vmatpush1.bf16.msra.mxu0 0
        %596 = vmatprep.subr.bf16.mxu0 0
        %597 = vmatpush1.bf16.msra.mxu0 0
        %598 = vmatprep.subr.bf16.mxu0 0
        %599 = vmatpush1.bf16.msra.mxu0 0
        %600 = vmatprep.subr.bf16.mxu0 0
        %601 = vmatpush1.bf16.msra.mxu0 0
        %602 = vmatprep.subr.bf16.mxu0 0
        %603 = vmatpush1.bf16.msra.mxu0 0
        %604 = vmatprep.subr.bf16.mxu0 0
        %605 = vmatpush1.bf16.msra.mxu0 0
        %606 = vmatprep.subr.bf16.mxu0 0
        %607 = vmatpush1.bf16.msra.mxu0 0
        %608 = vmatprep.subr.bf16.mxu0 0
        %609 = vmatpush1.bf16.msra.mxu0 0
        %610 = vmatprep.mubr.bf16.mxu0 0
        %611 = vmatmul.mubr.bf16.gmra.mrb[0].mxu0 %v576
        %v612 = vpop.f32.mrb[0].mxu0
        %v613 = vadd.f32 %v560, %v612
        %v614 = vpop.f32.mrb[0].mxu0
        %v615 = vpop.f32.mrb[0].mxu0
        %v616 = vpop.f32.mrb[0].mxu0
        %617 = vdwg.mxu0
        %v618 = vpack.c.bf16 %v613, %v613
        %s619 = smul.addr %s547, 4
        %s620 = scalar_lea.vmem [#allocation12], %s619
        %v621 = vld [vmem:[%s620] sm:$0xf]
        %v622 = vld [vmem:[%s620 + $0x4] sm:$0xf]
        %v623 = vld [vmem:[%s620 + $0x8] sm:$0xf]
        %v624 = vld [vmem:[%s620 + $0xc] sm:$0xf]
        %s625 = scalar_lea.vmem %s7, %s38
        %v626 = vld [vmem:[%s625] sm:$0x1]
        %v628 = vlaneseq
        %v629 = vshrl.u32 %v628, 7
        %v630 = vsub.s32 0, %v629
        %v631 = vrot.slane %v626, %v630
        %v637 = vunpack.c.l.b16 %v621
        %v638 = vunpack.c.l.b16 %v622
        %v639 = vunpack.c.l.b16 %v623
        %v640 = vunpack.c.l.b16 %v624
        %v641 = vpack.c.b16 %v638, %v637
        %v642 = vpack.c.b16 %v640, %v639
        %v646 = vsel %vm574, %v544, 0
        %648 = vmatprep.subr.bf16.mxu0 0
        %649 = vmatpush1.bf16.msra.mxu0 %v641
        %650 = vmatprep.subr.bf16.mxu0 0
        %651 = vmatpush1.bf16.msra.mxu0 %v642
        %652 = vmatprep.subr.bf16.mxu0 0
        %653 = vmatpush1.bf16.msra.mxu0 0
        %654 = vmatprep.subr.bf16.mxu0 0
        %655 = vmatpush1.bf16.msra.mxu0 0
        %656 = vmatprep.subr.bf16.mxu0 0
        %657 = vmatpush1.bf16.msra.mxu0 0
        %658 = vmatprep.subr.bf16.mxu0 0
        %659 = vmatpush1.bf16.msra.mxu0 0
        %660 = vmatprep.subr.bf16.mxu0 0
        %661 = vmatpush1.bf16.msra.mxu0 0
        %662 = vmatprep.subr.bf16.mxu0 0
        %663 = vmatpush1.bf16.msra.mxu0 0
        %664 = vmatprep.subr.bf16.mxu0 0
        %665 = vmatpush1.bf16.msra.mxu0 0
        %666 = vmatprep.subr.bf16.mxu0 0
        %667 = vmatpush1.bf16.msra.mxu0 0
        %668 = vmatprep.subr.bf16.mxu0 0
        %669 = vmatpush1.bf16.msra.mxu0 0
        %670 = vmatprep.subr.bf16.mxu0 0
        %671 = vmatpush1.bf16.msra.mxu0 0
        %672 = vmatprep.subr.bf16.mxu0 0
        %673 = vmatpush1.bf16.msra.mxu0 0
        %674 = vmatprep.subr.bf16.mxu0 0
        %675 = vmatpush1.bf16.msra.mxu0 0
        %676 = vmatprep.subr.bf16.mxu0 0
        %677 = vmatpush1.bf16.msra.mxu0 0
        %678 = vmatprep.subr.bf16.mxu0 0
        %679 = vmatpush1.bf16.msra.mxu0 0
        %680 = vmatprep.mubr.bf16.mxu0 0
        %681 = vmatmul.mubr.bf16.gmra.mrb[0].mxu0 %v646
        %v682 = vpop.f32.mrb[0].mxu0
        %v683 = vadd.f32 %v631, %v682
        %v684 = vpop.f32.mrb[0].mxu0
        %v685 = vpop.f32.mrb[0].mxu0
        %v686 = vpop.f32.mrb[0].mxu0
        %687 = vdwg.mxu0
        %v688 = vpack.c.bf16 %v683, %v683
        %s689 = smul.addr %s547, 4
        %s690 = scalar_lea.vmem %s5, %s689
        %v691 = vld [vmem:[%s690] sm:$0xf]
        %v692 = vld [vmem:[%s690 + $0x4] sm:$0xf]
        %v693 = vld [vmem:[%s690 + $0x8] sm:$0xf]
        %v694 = vld [vmem:[%s690 + $0xc] sm:$0xf]
        %s695 = scalar_lea.vmem [#allocation13], %s38
        %v696 = vld [vmem:[%s695] sm:$0x1]
        %v698 = vlaneseq
        %v699 = vshrl.u32 %v698, 7
        %v700 = vsub.s32 0, %v699
        %v701 = vrot.slane %v696, %v700
        %v707 = vunpack.c.l.b16 %v691
        %v708 = vunpack.c.l.b16 %v692
        %v709 = vunpack.c.l.b16 %v693
        %v710 = vunpack.c.l.b16 %v694
        %v711 = vpack.c.b16 %v708, %v707
        %v712 = vpack.c.b16 %v710, %v709
        %v716 = vsel %vm574, %v546, 0
        %718 = vmatprep.subr.bf16.mxu0 0
        %719 = vmatpush1.bf16.msra.mxu0 %v711
        %720 = vmatprep.subr.bf16.mxu0 0
        %721 = vmatpush1.bf16.msra.mxu0 %v712
        %722 = vmatprep.subr.bf16.mxu0 0
        %723 = vmatpush1.bf16.msra.mxu0 0
        %724 = vmatprep.subr.bf16.mxu0 0
        %725 = vmatpush1.bf16.msra.mxu0 0
        %726 = vmatprep.subr.bf16.mxu0 0
        %727 = vmatpush1.bf16.msra.mxu0 0
        %728 = vmatprep.subr.bf16.mxu0 0
        %729 = vmatpush1.bf16.msra.mxu0 0
        %730 = vmatprep.subr.bf16.mxu0 0
        %731 = vmatpush1.bf16.msra.mxu0 0
        %732 = vmatprep.subr.bf16.mxu0 0
        %733 = vmatpush1.bf16.msra.mxu0 0
        %734 = vmatprep.subr.bf16.mxu0 0
        %735 = vmatpush1.bf16.msra.mxu0 0
        %736 = vmatprep.subr.bf16.mxu0 0
        %737 = vmatpush1.bf16.msra.mxu0 0
        %738 = vmatprep.subr.bf16.mxu0 0
        %739 = vmatpush1.bf16.msra.mxu0 0
        %740 = vmatprep.subr.bf16.mxu0 0
        %741 = vmatpush1.bf16.msra.mxu0 0
        %742 = vmatprep.subr.bf16.mxu0 0
        %743 = vmatpush1.bf16.msra.mxu0 0
        %744 = vmatprep.subr.bf16.mxu0 0
        %745 = vmatpush1.bf16.msra.mxu0 0
        %746 = vmatprep.subr.bf16.mxu0 0
        %747 = vmatpush1.bf16.msra.mxu0 0
        %748 = vmatprep.subr.bf16.mxu0 0
        %749 = vmatpush1.bf16.msra.mxu0 0
        %750 = vmatprep.mubr.bf16.mxu0 0
        %751 = vmatmul.mubr.bf16.gmra.mrb[0].mxu0 %v716
        %v752 = vpop.f32.mrb[0].mxu0
        %v753 = vadd.f32 %v701, %v752
        %v754 = vpop.f32.mrb[0].mxu0
        %v755 = vpop.f32.mrb[0].mxu0
        %v756 = vpop.f32.mrb[0].mxu0
        %757 = vdwg.mxu0
        %v758 = vpack.c.bf16 %v753, %v753
        %vm759 = vcmask 64512
        %v761 = vsel %vm759, %v618, 0
        %v764 = vsel %vm759, %v688, 0
        %766 = vmatprep.subr.bf16.mxu0 0
        %767 = vmatpush1.bf16.xpose.msra.mxu0 %v764
        %768 = vmatprep.subr.bf16.mxu0 0
        %769 = vmatpush1.bf16.xpose.msra.mxu0 0
        %770 = vmatprep.subr.bf16.mxu0 0
        %771 = vmatpush1.bf16.xpose.msra.mxu0 0
        %772 = vmatprep.subr.bf16.mxu0 0
        %773 = vmatpush1.bf16.xpose.msra.mxu0 0
        %774 = vmatprep.subr.bf16.mxu0 0
        %775 = vmatpush1.bf16.xpose.msra.mxu0 0
        %776 = vmatprep.subr.bf16.mxu0 0
        %777 = vmatpush1.bf16.xpose.msra.mxu0 0
        %778 = vmatprep.subr.bf16.mxu0 0
        %779 = vmatpush1.bf16.xpose.msra.mxu0 0
        %780 = vmatprep.subr.bf16.mxu0 0
        %781 = vmatpush1.bf16.xpose.msra.mxu0 0
        %782 = vmatprep.subr.bf16.mxu0 0
        %783 = vmatpush1.bf16.xpose.msra.mxu0 0
        %784 = vmatprep.subr.bf16.mxu0 0
        %785 = vmatpush1.bf16.xpose.msra.mxu0 0
        %786 = vmatprep.subr.bf16.mxu0 0
        %787 = vmatpush1.bf16.xpose.msra.mxu0 0
        %788 = vmatprep.subr.bf16.mxu0 0
        %789 = vmatpush1.bf16.xpose.msra.mxu0 0
        %790 = vmatprep.subr.bf16.mxu0 0
        %791 = vmatpush1.bf16.xpose.msra.mxu0 0
        %792 = vmatprep.subr.bf16.mxu0 0
        %793 = vmatpush1.bf16.xpose.msra.mxu0 0
        %794 = vmatprep.subr.bf16.mxu0 0
        %795 = vmatpush1.bf16.xpose.msra.mxu0 0
        %796 = vmatprep.subr.bf16.mxu0 0
        %797 = vmatpush1.bf16.xpose.msra.mxu0 0
        %798 = vmatprep.mubr.bf16.mxu0 0
        %799 = vmatmul.mubr.bf16.gmra.mrb[0].mxu0 %v761
        %v800 = vpop.f32.mrb[0].mxu0
        %v801 = vadd.f32 0.0, %v800
        %v802 = vpop.f32.mrb[0].mxu0
        %v803 = vpop.f32.mrb[0].mxu0
        %v804 = vpop.f32.mrb[0].mxu0
        %805 = vdwg.mxu0
        %v806 = vsel %vm759, %v801, -inf
        %807 = vmax.xlane.f32.xlu0 %v806
        %v808 = vpop.xlane.xlu0 %807
        %v809 = vsub.f32 %v801, %v808
        %v810 = vmul.f32 %v809, 1.442695
        %v811 = vpow.pop %v810
        %v812 = vsel %vm759, %v811, 0.0
        %813 = vadd.xlane.f32.xlu0 %v812
        %v814 = vpop.xlane.xlu0 %813
        %v815 = vrcp.pop %v814
        %v816 = vmul.f32 %v811, %v815
        %v817 = vpack.c.bf16 %v816, %v816
        %v819 = vsel %vm759, %v817, 0
        %vm821 = vcmask 1043456
        %v823 = vsel %vm821, %v758, 0
        %825 = vmatprep.subr.bf16.mxu0 0
        %826 = vmatpush1.bf16.msra.mxu0 %v823
        %827 = vmatprep.subr.bf16.mxu0 0
        %828 = vmatpush1.bf16.msra.mxu0 0
        %829 = vmatprep.subr.bf16.mxu0 0
        %830 = vmatpush1.bf16.msra.mxu0 0
        %831 = vmatprep.subr.bf16.mxu0 0
        %832 = vmatpush1.bf16.msra.mxu0 0
        %833 = vmatprep.subr.bf16.mxu0 0
        %834 = vmatpush1.bf16.msra.mxu0 0
        %835 = vmatprep.subr.bf16.mxu0 0
        %836 = vmatpush1.bf16.msra.mxu0 0
        %837 = vmatprep.subr.bf16.mxu0 0
        %838 = vmatpush1.bf16.msra.mxu0 0
        %839 = vmatprep.subr.bf16.mxu0 0
        %840 = vmatpush1.bf16.msra.mxu0 0
        %841 = vmatprep.subr.bf16.mxu0 0
        %842 = vmatpush1.bf16.msra.mxu0 0
        %843 = vmatprep.subr.bf16.mxu0 0
        %844 = vmatpush1.bf16.msra.mxu0 0
        %845 = vmatprep.subr.bf16.mxu0 0
        %846 = vmatpush1.bf16.msra.mxu0 0
        %847 = vmatprep.subr.bf16.mxu0 0
        %848 = vmatpush1.bf16.msra.mxu0 0
        %849 = vmatprep.subr.bf16.mxu0 0
        %850 = vmatpush1.bf16.msra.mxu0 0
        %851 = vmatprep.subr.bf16.mxu0 0
        %852 = vmatpush1.bf16.msra.mxu0 0
        %853 = vmatprep.subr.bf16.mxu0 0
        %854 = vmatpush1.bf16.msra.mxu0 0
        %855 = vmatprep.subr.bf16.mxu0 0
        %856 = vmatpush1.bf16.msra.mxu0 0
        %857 = vmatprep.mubr.bf16.mxu0 0
        %858 = vmatmul.mubr.bf16.gmra.mrb[0].mxu0 %v819
        %v859 = vpop.f32.mrb[0].mxu0
        %v860 = vadd.f32 0.0, %v859
        %v861 = vpop.f32.mrb[0].mxu0
        %v862 = vpop.f32.mrb[0].mxu0
        %v863 = vpop.f32.mrb[0].mxu0
        %864 = vdwg.mxu0
        %v865 = vpack.c.bf16 %v860, %v860
        %vm866 = vcmask 60416
        %867 = vst.msk [vmem:[#allocation3] sm:$0xf] %vm866, %v865
        %869 = vrot.lane.b32.xlu0 %v618, 120
        %v870 = vpop.permute.xlu0 %869
        %872 = vrot.lane.b32.xlu0 %v688, 120
        %v873 = vpop.permute.xlu0 %872
        %v875 = vsel %vm759, %v870, 0
        %v878 = vsel %vm759, %v873, 0
        %880 = vmatprep.subr.bf16.mxu0 0
        %881 = vmatpush1.bf16.xpose.msra.mxu0 %v878
        %882 = vmatprep.subr.bf16.mxu0 0
        %883 = vmatpush1.bf16.xpose.msra.mxu0 0
        %884 = vmatprep.subr.bf16.mxu0 0
        %885 = vmatpush1.bf16.xpose.msra.mxu0 0
        %886 = vmatprep.subr.bf16.mxu0 0
        %887 = vmatpush1.bf16.xpose.msra.mxu0 0
        %888 = vmatprep.subr.bf16.mxu0 0
        %889 = vmatpush1.bf16.xpose.msra.mxu0 0
        %890 = vmatprep.subr.bf16.mxu0 0
        %891 = vmatpush1.bf16.xpose.msra.mxu0 0
        %892 = vmatprep.subr.bf16.mxu0 0
        %893 = vmatpush1.bf16.xpose.msra.mxu0 0
        %894 = vmatprep.subr.bf16.mxu0 0
        %895 = vmatpush1.bf16.xpose.msra.mxu0 0
        %896 = vmatprep.subr.bf16.mxu0 0
        %897 = vmatpush1.bf16.xpose.msra.mxu0 0
        %898 = vmatprep.subr.bf16.mxu0 0
        %899 = vmatpush1.bf16.xpose.msra.mxu0 0
        %900 = vmatprep.subr.bf16.mxu0 0
        %901 = vmatpush1.bf16.xpose.msra.mxu0 0
        %902 = vmatprep.subr.bf16.mxu0 0
        %903 = vmatpush1.bf16.xpose.msra.mxu0 0
        %904 = vmatprep.subr.bf16.mxu0 0
        %905 = vmatpush1.bf16.xpose.msra.mxu0 0
        %906 = vmatprep.subr.bf16.mxu0 0
        %907 = vmatpush1.bf16.xpose.msra.mxu0 0
        %908 = vmatprep.subr.bf16.mxu0 0
        %909 = vmatpush1.bf16.xpose.msra.mxu0 0
        %910 = vmatprep.subr.bf16.mxu0 0
        %911 = vmatpush1.bf16.xpose.msra.mxu0 0
        %912 = vmatprep.mubr.bf16.mxu0 0
        %913 = vmatmul.mubr.bf16.gmra.mrb[0].mxu0 %v875
        %v914 = vpop.f32.mrb[0].mxu0
        %v915 = vadd.f32 0.0, %v914
        %v916 = vpop.f32.mrb[0].mxu0
        %v917 = vpop.f32.mrb[0].mxu0
        %v918 = vpop.f32.mrb[0].mxu0
        %919 = vdwg.mxu0
        %v920 = vsel %vm759, %v915, -inf
        %921 = vmax.xlane.f32.xlu0 %v920
        %v922 = vpop.xlane.xlu0 %921
        %v923 = vsub.f32 %v915, %v922
        %v924 = vmul.f32 %v923, 1.442695
        %v925 = vpow.pop %v924
        %v926 = vsel %vm759, %v925, 0.0
        %927 = vadd.xlane.f32.xlu0 %v926
        %v928 = vpop.xlane.xlu0 %927
        %v929 = vrcp.pop %v928
        %v930 = vmul.f32 %v925, %v929
        %v931 = vpack.c.bf16 %v930, %v930
        %933 = vrot.lane.b32.xlu0 %v758, 120
        %v934 = vpop.permute.xlu0 %933
        %v936 = vsel %vm759, %v931, 0
        %v939 = vsel %vm821, %v934, 0
        %941 = vmatprep.subr.bf16.mxu0 0
        %942 = vmatpush1.bf16.msra.mxu0 %v939
        %943 = vmatprep.subr.bf16.mxu0 0
        %944 = vmatpush1.bf16.msra.mxu0 0
        %945 = vmatprep.subr.bf16.mxu0 0
        %946 = vmatpush1.bf16.msra.mxu0 0
        %947 = vmatprep.subr.bf16.mxu0 0
        %948 = vmatpush1.bf16.msra.mxu0 0
        %949 = vmatprep.subr.bf16.mxu0 0
        %950 = vmatpush1.bf16.msra.mxu0 0
        %951 = vmatprep.subr.bf16.mxu0 0
        %952 = vmatpush1.bf16.msra.mxu0 0
        %953 = vmatprep.subr.bf16.mxu0 0
        %954 = vmatpush1.bf16.msra.mxu0 0
        %955 = vmatprep.subr.bf16.mxu0 0
        %956 = vmatpush1.bf16.msra.mxu0 0
        %957 = vmatprep.subr.bf16.mxu0 0
        %958 = vmatpush1.bf16.msra.mxu0 0
        %959 = vmatprep.subr.bf16.mxu0 0
        %960 = vmatpush1.bf16.msra.mxu0 0
        %961 = vmatprep.subr.bf16.mxu0 0
        %962 = vmatpush1.bf16.msra.mxu0 0
        %963 = vmatprep.subr.bf16.mxu0 0
        %964 = vmatpush1.bf16.msra.mxu0 0
        %965 = vmatprep.subr.bf16.mxu0 0
        %966 = vmatpush1.bf16.msra.mxu0 0
        %967 = vmatprep.subr.bf16.mxu0 0
        %968 = vmatpush1.bf16.msra.mxu0 0
        %969 = vmatprep.subr.bf16.mxu0 0
        %970 = vmatpush1.bf16.msra.mxu0 0
        %971 = vmatprep.subr.bf16.mxu0 0
        %972 = vmatpush1.bf16.msra.mxu0 0
        %973 = vmatprep.mubr.bf16.mxu0 0
        %974 = vmatmul.mubr.bf16.gmra.mrb[0].mxu0 %v936
        %v975 = vpop.f32.mrb[0].mxu0
        %v976 = vadd.f32 0.0, %v975
        %v977 = vpop.f32.mrb[0].mxu0
        %v978 = vpop.f32.mrb[0].mxu0
        %v979 = vpop.f32.mrb[0].mxu0
        %980 = vdwg.mxu0
        %v981 = vpack.c.bf16 %v976, %v976
        %v983 = vunpack.c.l.b16 %v981
        %v984 = vpack.c.b16 %v983, %v983
        %985 = vrot.lane.b32.xlu0 %v984, 8
        %v986 = vpop.permute.xlu0 %985
        %vm988 = vcmask 126016
        %989 = vst.msk [vmem:[#allocation3] sm:$0xf] %vm988, %v986
        %990 = vrot.lane.b32.xlu0 %v618, 112
        %v991 = vpop.permute.xlu0 %990
        %992 = vrot.lane.b32.xlu0 %v688, 112
        %v993 = vpop.permute.xlu0 %992
        %v995 = vsel %vm759, %v991, 0
        %v998 = vsel %vm759, %v993, 0
        %1000 = vmatprep.subr.bf16.mxu0 0
        %1001 = vmatpush1.bf16.xpose.msra.mxu0 %v998
        %1002 = vmatprep.subr.bf16.mxu0 0
        %1003 = vmatpush1.bf16.xpose.msra.mxu0 0
        %1004 = vmatprep.subr.bf16.mxu0 0
        %1005 = vmatpush1.bf16.xpose.msra.mxu0 0
        %1006 = vmatprep.subr.bf16.mxu0 0
        %1007 = vmatpush1.bf16.xpose.msra.mxu0 0
        %1008 = vmatprep.subr.bf16.mxu0 0
        %1009 = vmatpush1.bf16.xpose.msra.mxu0 0
        %1010 = vmatprep.subr.bf16.mxu0 0
        %1011 = vmatpush1.bf16.xpose.msra.mxu0 0
        %1012 = vmatprep.subr.bf16.mxu0 0
        %1013 = vmatpush1.bf16.xpose.msra.mxu0 0
        %1014 = vmatprep.subr.bf16.mxu0 0
        %1015 = vmatpush1.bf16.xpose.msra.mxu0 0
        %1016 = vmatprep.subr.bf16.mxu0 0
        %1017 = vmatpush1.bf16.xpose.msra.mxu0 0
        %1018 = vmatprep.subr.bf16.mxu0 0
        %1019 = vmatpush1.bf16.xpose.msra.mxu0 0
        %1020 = vmatprep.subr.bf16.mxu0 0
        %1021 = vmatpush1.bf16.xpose.msra.mxu0 0
        %1022 = vmatprep.subr.bf16.mxu0 0
        %1023 = vmatpush1.bf16.xpose.msra.mxu0 0
        %1024 = vmatprep.subr.bf16.mxu0 0
        %1025 = vmatpush1.bf16.xpose.msra.mxu0 0
        %1026 = vmatprep.subr.bf16.mxu0 0
        %1027 = vmatpush1.bf16.xpose.msra.mxu0 0
        %1028 = vmatprep.subr.bf16.mxu0 0
        %1029 = vmatpush1.bf16.xpose.msra.mxu0 0
        %1030 = vmatprep.subr.bf16.mxu0 0
        %1031 = vmatpush1.bf16.xpose.msra.mxu0 0
        %1032 = vmatprep.mubr.bf16.mxu0 0
        %1033 = vmatmul.mubr.bf16.gmra.mrb[0].mxu0 %v995
        %v1034 = vpop.f32.mrb[0].mxu0
        %v1035 = vadd.f32 0.0, %v1034
        %v1036 = vpop.f32.mrb[0].mxu0
        %v1037 = vpop.f32.mrb[0].mxu0
        %v1038 = vpop.f32.mrb[0].mxu0
        %1039 = vdwg.mxu0
        %v1040 = vsel %vm759, %v1035, -inf
        %1041 = vmax.xlane.f32.xlu0 %v1040
        %v1042 = vpop.xlane.xlu0 %1041
        %v1043 = vsub.f32 %v1035, %v1042
        %v1044 = vmul.f32 %v1043, 1.442695
        %v1045 = vpow.pop %v1044
        %v1046 = vsel %vm759, %v1045, 0.0
        %1047 = vadd.xlane.f32.xlu0 %v1046
        %v1048 = vpop.xlane.xlu0 %1047
        %v1049 = vrcp.pop %v1048
        %v1050 = vmul.f32 %v1045, %v1049
        %v1051 = vpack.c.bf16 %v1050, %v1050
        %1052 = vrot.lane.b32.xlu0 %v758, 112
        %v1053 = vpop.permute.xlu0 %1052
        %v1055 = vsel %vm759, %v1051, 0
        %v1058 = vsel %vm821, %v1053, 0
        %1060 = vmatprep.subr.bf16.mxu0 0
        %1061 = vmatpush1.bf16.msra.mxu0 %v1058
        %1062 = vmatprep.subr.bf16.mxu0 0
        %1063 = vmatpush1.bf16.msra.mxu0 0
        %1064 = vmatprep.subr.bf16.mxu0 0
        %1065 = vmatpush1.bf16.msra.mxu0 0
        %1066 = vmatprep.subr.bf16.mxu0 0
        %1067 = vmatpush1.bf16.msra.mxu0 0
        %1068 = vmatprep.subr.bf16.mxu0 0
        %1069 = vmatpush1.bf16.msra.mxu0 0
        %1070 = vmatprep.subr.bf16.mxu0 0
        %1071 = vmatpush1.bf16.msra.mxu0 0
        %1072 = vmatprep.subr.bf16.mxu0 0
        %1073 = vmatpush1.bf16.msra.mxu0 0
        %1074 = vmatprep.subr.bf16.mxu0 0
        %1075 = vmatpush1.bf16.msra.mxu0 0
        %1076 = vmatprep.subr.bf16.mxu0 0
        %1077 = vmatpush1.bf16.msra.mxu0 0
        %1078 = vmatprep.subr.bf16.mxu0 0
        %1079 = vmatpush1.bf16.msra.mxu0 0
        %1080 = vmatprep.subr.bf16.mxu0 0
        %1081 = vmatpush1.bf16.msra.mxu0 0
        %1082 = vmatprep.subr.bf16.mxu0 0
        %1083 = vmatpush1.bf16.msra.mxu0 0
        %1084 = vmatprep.subr.bf16.mxu0 0
        %1085 = vmatpush1.bf16.msra.mxu0 0
        %1086 = vmatprep.subr.bf16.mxu0 0
        %1087 = vmatpush1.bf16.msra.mxu0 0
        %1088 = vmatprep.subr.bf16.mxu0 0
        %1089 = vmatpush1.bf16.msra.mxu0 0
        %1090 = vmatprep.subr.bf16.mxu0 0
        %1091 = vmatpush1.bf16.msra.mxu0 0
        %1092 = vmatprep.mubr.bf16.mxu0 0
        %1093 = vmatmul.mubr.bf16.gmra.mrb[0].mxu0 %v1055
        %v1094 = vpop.f32.mrb[0].mxu0
        %v1095 = vadd.f32 0.0, %v1094
        %v1096 = vpop.f32.mrb[0].mxu0
        %v1097 = vpop.f32.mrb[0].mxu0
        %v1098 = vpop.f32.mrb[0].mxu0
        %1099 = vdwg.mxu0
        %v1100 = vpack.c.bf16 %v1095, %v1095
        %v1102 = vunpack.c.l.b16 %v1100
        %v1103 = vpack.c.b16 %v1102, %v1102
        %1104 = vrot.lane.b32.xlu0 %v1103, 16
        %v1105 = vpop.permute.xlu0 %1104
        %vm1107 = vcmask 191616
        %1108 = vst.msk [vmem:[#allocation3] sm:$0xf] %vm1107, %v1105
        %1109 = vrot.lane.b32.xlu0 %v618, 104
        %v1110 = vpop.permute.xlu0 %1109
        %1111 = vrot.lane.b32.xlu0 %v688, 104
        %v1112 = vpop.permute.xlu0 %1111
        %v1114 = vsel %vm759, %v1110, 0
        %v1117 = vsel %vm759, %v1112, 0
        %1119 = vmatprep.subr.bf16.mxu0 0
        %1120 = vmatpush1.bf16.xpose.msra.mxu0 %v1117
        %1121 = vmatprep.subr.bf16.mxu0 0
        %1122 = vmatpush1.bf16.xpose.msra.mxu0 0
        %1123 = vmatprep.subr.bf16.mxu0 0
        %1124 = vmatpush1.bf16.xpose.msra.mxu0 0
        %1125 = vmatprep.subr.bf16.mxu0 0
        %1126 = vmatpush1.bf16.xpose.msra.mxu0 0
        %1127 = vmatprep.subr.bf16.mxu0 0
        %1128 = vmatpush1.bf16.xpose.msra.mxu0 0
        %1129 = vmatprep.subr.bf16.mxu0 0
        %1130 = vmatpush1.bf16.xpose.msra.mxu0 0
        %1131 = vmatprep.subr.bf16.mxu0 0
        %1132 = vmatpush1.bf16.xpose.msra.mxu0 0
        %1133 = vmatprep.subr.bf16.mxu0 0
        %1134 = vmatpush1.bf16.xpose.msra.mxu0 0
        %1135 = vmatprep.subr.bf16.mxu0 0
        %1136 = vmatpush1.bf16.xpose.msra.mxu0 0
        %1137 = vmatprep.subr.bf16.mxu0 0
        %1138 = vmatpush1.bf16.xpose.msra.mxu0 0
        %1139 = vmatprep.subr.bf16.mxu0 0
        %1140 = vmatpush1.bf16.xpose.msra.mxu0 0
        %1141 = vmatprep.subr.bf16.mxu0 0
        %1142 = vmatpush1.bf16.xpose.msra.mxu0 0
        %1143 = vmatprep.subr.bf16.mxu0 0
        %1144 = vmatpush1.bf16.xpose.msra.mxu0 0
        %1145 = vmatprep.subr.bf16.mxu0 0
        %1146 = vmatpush1.bf16.xpose.msra.mxu0 0
        %1147 = vmatprep.subr.bf16.mxu0 0
        %1148 = vmatpush1.bf16.xpose.msra.mxu0 0
        %1149 = vmatprep.subr.bf16.mxu0 0
        %1150 = vmatpush1.bf16.xpose.msra.mxu0 0
        %1151 = vmatprep.mubr.bf16.mxu0 0
        %1152 = vmatmul.mubr.bf16.gmra.mrb[0].mxu0 %v1114
        %v1153 = vpop.f32.mrb[0].mxu0
        %v1154 = vadd.f32 0.0, %v1153
        %v1155 = vpop.f32.mrb[0].mxu0
        %v1156 = vpop.f32.mrb[0].mxu0
        %v1157 = vpop.f32.mrb[0].mxu0
        %1158 = vdwg.mxu0
        %v1159 = vsel %vm759, %v1154, -inf
        %1160 = vmax.xlane.f32.xlu0 %v1159
        %v1161 = vpop.xlane.xlu0 %1160
        %v1162 = vsub.f32 %v1154, %v1161
        %v1163 = vmul.f32 %v1162, 1.442695
        %v1164 = vpow.pop %v1163
        %v1165 = vsel %vm759, %v1164, 0.0
        %1166 = vadd.xlane.f32.xlu0 %v1165
        %v1167 = vpop.xlane.xlu0 %1166
        %v1168 = vrcp.pop %v1167
        %v1169 = vmul.f32 %v1164, %v1168
        %v1170 = vpack.c.bf16 %v1169, %v1169
        %1171 = vrot.lane.b32.xlu0 %v758, 104
        %v1172 = vpop.permute.xlu0 %1171
        %v1174 = vsel %vm759, %v1170, 0
        %v1177 = vsel %vm821, %v1172, 0
        %1179 = vmatprep.subr.bf16.mxu0 0
        %1180 = vmatpush1.bf16.msra.mxu0 %v1177
        %1181 = vmatprep.subr.bf16.mxu0 0
        %1182 = vmatpush1.bf16.msra.mxu0 0
        %1183 = vmatprep.subr.bf16.mxu0 0
        %1184 = vmatpush1.bf16.msra.mxu0 0
        %1185 = vmatprep.subr.bf16.mxu0 0
        %1186 = vmatpush1.bf16.msra.mxu0 0
        %1187 = vmatprep.subr.bf16.mxu0 0
        %1188 = vmatpush1.bf16.msra.mxu0 0
        %1189 = vmatprep.subr.bf16.mxu0 0
        %1190 = vmatpush1.bf16.msra.mxu0 0
        %1191 = vmatprep.subr.bf16.mxu0 0
        %1192 = vmatpush1.bf16.msra.mxu0 0
        %1193 = vmatprep.subr.bf16.mxu0 0
        %1194 = vmatpush1.bf16.msra.mxu0 0
        %1195 = vmatprep.subr.bf16.mxu0 0
        %1196 = vmatpush1.bf16.msra.mxu0 0
        %1197 = vmatprep.subr.bf16.mxu0 0
        %1198 = vmatpush1.bf16.msra.mxu0 0
        %1199 = vmatprep.subr.bf16.mxu0 0
        %1200 = vmatpush1.bf16.msra.mxu0 0
        %1201 = vmatprep.subr.bf16.mxu0 0
        %1202 = vmatpush1.bf16.msra.mxu0 0
        %1203 = vmatprep.subr.bf16.mxu0 0
        %1204 = vmatpush1.bf16.msra.mxu0 0
        %1205 = vmatprep.subr.bf16.mxu0 0
        %1206 = vmatpush1.bf16.msra.mxu0 0
        %1207 = vmatprep.subr.bf16.mxu0 0
        %1208 = vmatpush1.bf16.msra.mxu0 0
        %1209 = vmatprep.subr.bf16.mxu0 0
        %1210 = vmatpush1.bf16.msra.mxu0 0
        %1211 = vmatprep.mubr.bf16.mxu0 0
        %1212 = vmatmul.mubr.bf16.gmra.mrb[0].mxu0 %v1174
        %v1213 = vpop.f32.mrb[0].mxu0
        %v1214 = vadd.f32 0.0, %v1213
        %v1215 = vpop.f32.mrb[0].mxu0
        %v1216 = vpop.f32.mrb[0].mxu0
        %v1217 = vpop.f32.mrb[0].mxu0
        %1218 = vdwg.mxu0
        %v1219 = vpack.c.bf16 %v1214, %v1214
        %v1221 = vunpack.c.l.b16 %v1219
        %v1222 = vpack.c.b16 %v1221, %v1221
        %1223 = vrot.lane.b32.xlu0 %v1222, 24
        %v1224 = vpop.permute.xlu0 %1223
        %vm1226 = vcmask 257216
        %1227 = vst.msk [vmem:[#allocation3] sm:$0xf] %vm1226, %v1224
        %v1228 = vld [vmem:[#allocation2] sm:$0xff]
        %v1229 = vld [vmem:[#allocation3] sm:$0xf]
        %s1230 = smul.addr %s547, 4
        %s1231 = scalar_lea.vmem %s9, %s1230
        %v1232 = vld [vmem:[%s1231] sm:$0xf]
        %v1233 = vld [vmem:[%s1231 + $0x4] sm:$0xf]
        %v1234 = vld [vmem:[%s1231 + $0x8] sm:$0xf]
        %v1235 = vld [vmem:[%s1231 + $0xc] sm:$0xf]
        %v1240 = vunpack.c.l.b16 %v1232
        %v1241 = vunpack.c.l.b16 %v1233
        %v1242 = vunpack.c.l.b16 %v1234
        %v1243 = vunpack.c.l.b16 %v1235
        %v1244 = vpack.c.b16 %v1241, %v1240
        %v1245 = vpack.c.b16 %v1243, %v1242
        %v1249 = vsel %vm574, %v1229, 0
        %1251 = vmatprep.subr.bf16.mxu0 0
        %1252 = vmatpush1.bf16.msra.mxu0 %v1244
        %1253 = vmatprep.subr.bf16.mxu0 0
        %1254 = vmatpush1.bf16.msra.mxu0 %v1245
        %1255 = vmatprep.subr.bf16.mxu0 0
        %1256 = vmatpush1.bf16.msra.mxu0 0
        %1257 = vmatprep.subr.bf16.mxu0 0
        %1258 = vmatpush1.bf16.msra.mxu0 0
        %1259 = vmatprep.subr.bf16.mxu0 0
        %1260 = vmatpush1.bf16.msra.mxu0 0
        %1261 = vmatprep.subr.bf16.mxu0 0
        %1262 = vmatpush1.bf16.msra.mxu0 0
        %1263 = vmatprep.subr.bf16.mxu0 0
        %1264 = vmatpush1.bf16.msra.mxu0 0
        %1265 = vmatprep.subr.bf16.mxu0 0
        %1266 = vmatpush1.bf16.msra.mxu0 0
        %1267 = vmatprep.subr.bf16.mxu0 0
        %1268 = vmatpush1.bf16.msra.mxu0 0
        %1269 = vmatprep.subr.bf16.mxu0 0
        %1270 = vmatpush1.bf16.msra.mxu0 0
        %1271 = vmatprep.subr.bf16.mxu0 0
        %1272 = vmatpush1.bf16.msra.mxu0 0
        %1273 = vmatprep.subr.bf16.mxu0 0
        %1274 = vmatpush1.bf16.msra.mxu0 0
        %1275 = vmatprep.subr.bf16.mxu0 0
        %1276 = vmatpush1.bf16.msra.mxu0 0
        %1277 = vmatprep.subr.bf16.mxu0 0
        %1278 = vmatpush1.bf16.msra.mxu0 0
        %1279 = vmatprep.subr.bf16.mxu0 0
        %1280 = vmatpush1.bf16.msra.mxu0 0
        %1281 = vmatprep.subr.bf16.mxu0 0
        %1282 = vmatpush1.bf16.msra.mxu0 0
        %1283 = vmatprep.mubr.bf16.mxu0 0
        %1284 = vmatmul.mubr.bf16.gmra.mrb[0].mxu0 %v1249
        %v1285 = vpop.f32.mrb[0].mxu0
        %v1286 = vadd.f32 0.0, %v1285
        %v1287 = vpop.f32.mrb[0].mxu0
        %v1288 = vpop.f32.mrb[0].mxu0
        %v1289 = vpop.f32.mrb[0].mxu0
        %1290 = vdwg.mxu0
        %v1291 = vadd.f32 %v1228, %v1286
        %1292 = vst.msk [vmem:[#allocation2] sm:$0xff] %vm574, %v1291
        // Predicated region
        $region93: #{tpu_custom_call.1} parent=63 // pred_check
          %p1293 = pneg %p528
        $region94: #{tpu_custom_call.1} parent=63 // pred_check_branch
          %1295 = sbr.rel (%p1293) target = $region96
        $region95: #{tpu_custom_call.1} parent=63 // pred_region
          %v1296 = vld [vmem:[#allocation2] sm:$0xff]
          %1297 = vst.msk [vmem:[%s526] sm:$0xff] %vm574, %v1296
        $region96: #{tpu_custom_call.1} parent=63 // pred_fallthru
          _
        %s1298 = sand.u32 %s299, 1
        %s1299 = scalar_lea.sflag [#allocation6], %s1298
        %s1300 = sand.u32 %s299, 1
        %s1301 = smul.addr %s1300, 8
        %s1302 = scalar_lea.vmem [#allocation15], %s1301
        // Predicated region
        $region97: #{tpu_custom_call.1} parent=63 // pred_check
          %p1303 = pneg %p309
        $region98: #{tpu_custom_call.1} parent=63 // pred_check_branch
          %1305 = sbr.rel (%p1303) target = $region100
        $region99: #{tpu_custom_call.1} parent=63 // pred_region
          %s1307 = ssub.s32 128, 128
          %1308 = vsyncadd %s1299, %s1307
          %s1309 = smul.addr %s37, 128
          %s1310 = scalar_lea.hbm %s11, %s1309
          %s1312 = sshll.u32 %s1302, 4
          %s1313 = int_to_ptr.vmem [resolvable:$true] %s1312
          %1315 = dma.vmem_to_hbm [thread:$0]  %s1313, 128, %s1310, %s1299
        $region100: #{tpu_custom_call.1} parent=63 // pred_fallthru
          _
      $region64: #{tpu_custom_call.1} parent=5 // pred_fallthru
        _
      %p1316 = scmp.le.s32.totalorder 2, %s28
      // Predicated region
      $region101: #{tpu_custom_call.1} parent=5 // pred_check
        %p1317 = pneg %p1316
      $region102: #{tpu_custom_call.1} parent=5 // pred_check_branch
        %1319 = sbr.rel (%p1317) target = $region104
      $region103: #{tpu_custom_call.1} parent=5 // pred_region
        %s1320 = ssub.s32 %s28, 2
        // Predicated region
        $region105: #{tpu_custom_call.1} parent=103 // pred_check
          %p1321 = pneg %p315
        $region106: #{tpu_custom_call.1} parent=103 // pred_check_branch
          %1323 = sbr.rel (%p1321) target = $region108
        $region107: #{tpu_custom_call.1} parent=103 // pred_region
          %s1324 = sand.u32 %s300, 1
          %s1325 = scalar_lea.sflag [#allocation6], %s1324
          %s1326 = sand.u32 %s300, 1
          %s1327 = smul.addr %s1326, 8
          %s1328 = scalar_lea.vmem [#allocation15], %s1327
          %1329 = dma.done %s1325, 128
        $region108: #{tpu_custom_call.1} parent=103 // pred_fallthru
          _
      $region104: #{tpu_custom_call.1} parent=5 // pred_fallthru
        _
    $region6: #{tpu_custom_call.1} parent=1 // loop_footer
      %s32 = sadd.s32 1, %s28
    $region7: #{tpu_custom_call.1} parent=1 // loop_footer_branch
      %27 = sbr.rel target = $region3
    $region8: #{tpu_custom_call.1} parent=1 // loop_exit
      _
    %1330 = vsyncpa [#allocation5], 1
    %s1331 = scalar_lea.sflag [#allocation5], 1
    %1332 = vsyncpa %s1331, 1
    %1333 = vsyncpa [#allocation8], 1
    %s1334 = scalar_lea.sflag [#allocation8], 1
    %1335 = vsyncpa %s1334, 1
    %1336 = vsyncpa [#allocation11], 1
    %1337 = vsyncpa [#allocation14], 1
    %1338 = vsyncpa [#allocation6], 1
    %s1339 = scalar_lea.sflag [#allocation6], 1
    %1340 = vsyncpa %s1339, 1

</llo_original>
